<compile_context>
chip_gen: v7x
topology: tpu7x:2x2x1
jax: 0.10.0
libtpu: 0.0.40
codegen_flags: <defaults>
</compile_context>

<pallas_src>
import functools

import jax
import jax.numpy as jnp
from jax import lax
from jax.experimental import pallas as pl
from jax.experimental.pallas import tpu as pltpu

EMBED = 32
HEADS = 4
HEAD_DIM = EMBED // HEADS
LN_EPS = 1e-5


# --------------------------------------------------------------------------
# Single fused kernel: QKV projection + attention + head merge + fc_out +
# residual + LayerNorm.  Whole working set (<~20 KB) lives in VMEM.
# --------------------------------------------------------------------------
def _fused_self_attention_kernel(xqkv_ref, res_ref, w3_ref, woT_ref, vec_ref,
                                 o_ref, *, N, L, H, hd):
    f32 = jnp.float32
    E = H * hd
    NH = N * H
    NL = N * L

    # --- fused q/k/v projection: ONE (N*H*L, 3*hd) x (3*hd, 3*hd) matmul -----
    # Block-diagonal weight -> one DMA'd activation, one MXU push with K=3*hd,
    # 24-lane operand instead of three 8-lane ones.
    qkv = jnp.dot(xqkv_ref[...], w3_ref[...], preferred_element_type=f32)   # (N*H*L, 3*hd)
    q = qkv[:, 0 * hd:1 * hd].reshape(NH, L, hd)
    k = qkv[:, 1 * hd:2 * hd].reshape(NH, L, hd)
    v = qkv[:, 2 * hd:3 * hd].reshape(NH, L, hd)

    # --- scaled dot-product attention, batched over (batch, head) groups -----
    scale = f32(1.0 / (hd ** 0.5))
    s = jnp.einsum('bqd,bkd->bqk', q, k, preferred_element_type=f32) * scale  # (NH, L, L)
    # TODO(synk): optional user `mask` (masked_fill(mask == 0, -1e9)) would be applied here.
    s = s - jnp.max(s, axis=-1, keepdims=True)
    p = jnp.exp(s)
    attn = p / jnp.sum(p, axis=-1, keepdims=True)        # exact divide; not EUP-bound here
    o = jnp.einsum('bqk,bkd->bqd', attn, v, preferred_element_type=f32)       # (NH, L, hd)

    # --- permute(0,2,1,3) + head merge + fc_out: one relayout + ONE K=E matmul
    o4 = o.reshape(N, H, L, hd)
    o_merged = jnp.concatenate([o4[:, h] for h in range(H)], axis=-1)         # (N, L, E)
    o_merged = o_merged.reshape(NL, E)

    vp = vec_ref[...]                                    # (3, E): [b_out; ln_gamma; ln_beta]
    bias, gamma, beta = vp[0:1, :], vp[1:2, :], vp[2:3, :]

    y = res_ref[...] + bias + jnp.dot(o_merged, woT_ref[...],
                                      preferred_element_type=f32)             # (NL, E)

    # --- LayerNorm(E) (+ eval-mode Dropout(0.1) == identity) ------------------
    mean = jnp.mean(y, axis=-1, keepdims=True)
    var = jnp.mean((y - mean) ** 2, axis=-1, keepdims=True)   # biased, like torch LayerNorm
    y = (y - mean) * lax.rsqrt(var + LN_EPS) * gamma + beta
    o_ref[...] = y.astype(o_ref.dtype)


# --------------------------------------------------------------------------
# One-time parameter layout prep (hoisted out of the per-call path).
# --------------------------------------------------------------------------
def prepare_params(params):
    hd, E = HEAD_DIM, EMBED
    w3 = jnp.zeros((3 * hd, 3 * hd), jnp.float32)
    w3 = w3.at[0 * hd:1 * hd, 0 * hd:1 * hd].set(params["wq"].T)
    w3 = w3.at[1 * hd:2 * hd, 1 * hd:2 * hd].set(params["wk"].T)
    w3 = w3.at[2 * hd:3 * hd, 2 * hd:3 * hd].set(params["wv"].T)
    return {
        "w3": w3,                                                      # (3*hd, 3*hd) block-diag
        "woT": params["w_out"].T.astype(jnp.float32),                  # (E, E) pre-transposed
        "vec": jnp.stack([params["b_out"], params["ln_w"], params["ln_b"]],
                         axis=0).astype(jnp.float32),                  # (3, E)
    }


# --------------------------------------------------------------------------
# Wrapper: layout plumbing + one no-grid pallas_call.
# --------------------------------------------------------------------------
@jax.jit
def self_attention_forward(value, key, query, prepped):
    """Matches SelfAttention.forward(value, key, query, mask=None) in eval mode."""
    N, L, E = query.shape
    H = HEADS
    hd = E // H
    NHL = N * H * L
    NL = N * L

    # MHA is invoked as multi_head_attention(value, key, query):
    #   MHA.query  <- outer `value` -> Wq (queries)
    #   MHA.keys   <- outer `query` -> Wk (keys)
    #   MHA.values <- outer `key`   -> Wv (values)
    # The PyTorch reshape(N, heads, len, head_dim) is a plain row-major
    # reinterpretation, so flattening to (N*heads*len, head_dim) reproduces it exactly.
    qin = value.reshape(NHL, hd)
    kin = query.reshape(NHL, hd)
    vin = key.reshape(NHL, hd)
    xqkv = jnp.concatenate([qin, kin, vin], axis=1)        # (NHL, 3*hd), matches w3 block order
    res2d = query.reshape(NL, E)                           # residual uses outer `query`

    vmem = pl.BlockSpec(memory_space=pltpu.MemorySpace.VMEM)

    out2d = pl.pallas_call(
        functools.partial(_fused_self_attention_kernel, N=N, L=L, H=H, hd=hd),
        out_shape=jax.ShapeDtypeStruct((NL, E), jnp.float32),
        in_specs=[vmem] * 5,          # whole arrays in VMEM, no grid, no pipeline buffers
        out_specs=vmem,
    )(xqkv, res2d, prepped["w3"], prepped["woT"], prepped["vec"])

    # Dropout(0.1) in eval mode is identity.
    return out2d.reshape(N, L, E)


# --------------------------------------------------------------------------
# Pure-JAX reference (for correctness check).
# --------------------------------------------------------------------------
def reference_forward(value, key, query, params):
    N, L, E = query.shape
    hd = E // HEADS
    q = value.reshape(N, HEADS, L, hd) @ params["wq"].T
    v = key.reshape(N, HEADS, L, hd) @ params["wv"].T
    k = query.reshape(N, HEADS, L, hd) @ params["wk"].T
    scores = (q @ jnp.swapaxes(k, -1, -2)) / jnp.sqrt(jnp.float32(hd))
    attn = jax.nn.softmax(scores, axis=-1)
    out = attn @ v
    out = jnp.transpose(out, (0, 2, 1, 3)).reshape(N, L, E)
    out = out @ params["w_out"].T + params["b_out"]
    y = out + query
    mean = y.mean(-1, keepdims=True)
    var = ((y - mean) ** 2).mean(-1, keepdims=True)
    return (y - mean) / jnp.sqrt(var + LN_EPS) * params["ln_w"] + params["ln_b"]


# --------------------------------------------------------------------------
def make_params(key):
    ks = jax.random.split(key, 7)
    scale_h = 1.0 / jnp.sqrt(jnp.float32(HEAD_DIM))
    scale_e = 1.0 / jnp.sqrt(jnp.float32(EMBED))
    return {
        "wq": jax.random.uniform(ks[0], (HEAD_DIM, HEAD_DIM), jnp.float32, -scale_h, scale_h),
        "wk": jax.random.uniform(ks[1], (HEAD_DIM, HEAD_DIM), jnp.float32, -scale_h, scale_h),
        "wv": jax.random.uniform(ks[2], (HEAD_DIM, HEAD_DIM), jnp.float32, -scale_h, scale_h),
        "w_out": jax.random.uniform(ks[3], (EMBED, EMBED), jnp.float32, -scale_e, scale_e),
        "b_out": jax.random.uniform(ks[4], (EMBED,), jnp.float32, -scale_e, scale_e),
        "ln_w": jnp.ones((EMBED,), jnp.float32),
        "ln_b": jnp.zeros((EMBED,), jnp.float32),
    }


if __name__ == "__main__":
    N, L = 2, 8
    root = jax.random.PRNGKey(0)
    k_v, k_k, k_q, k_p = jax.random.split(root, 4)

    value = jax.random.normal(k_v, (N, L, EMBED), jnp.float32)
    key_ = jax.random.normal(k_k, (N, L, EMBED), jnp.float32)
    query = jax.random.normal(k_q, (N, L, EMBED), jnp.float32)
    params = make_params(k_p)
    prepped = prepare_params(params)       # one-time layout prep, reused across calls

    out = self_attention_forward(value, key_, query, prepped)
    out = jax.block_until_ready(out)

    ref = jax.block_until_ready(reference_forward(value, key_, query, params))
    assert out.shape == (N, L, EMBED)
    assert jnp.allclose(out, ref, atol=1e-2, rtol=1e-2), "mismatch vs reference"

    print("KERNEL_OK")
</pallas_src>

<mosaic_0001>
module attributes {stable_mosaic.version = 11 : i64} {
  func.func @_fused_self_attention_kernel(%arg0: memref<64x24xf32, #tpu.memory_space<vmem>>, %arg1: memref<16x32xf32, #tpu.memory_space<vmem>>, %arg2: memref<24x24xf32, #tpu.memory_space<vmem>>, %arg3: memref<32x32xf32, #tpu.memory_space<vmem>>, %arg4: memref<3x32xf32, #tpu.memory_space<vmem>>, %arg5: memref<16x32xf32, #tpu.memory_space<vmem>>) attributes {dimension_semantics = [], scalar_prefetch = 0 : i64, scratch_operands = 0 : i64, tpu.core_type = #tpu.core_type<tc>} {
    %c0 = arith.constant 0 : index
    %c0_0 = arith.constant 0 : index
    %0 = vector.load %arg0[%c0, %c0_0] : memref<64x24xf32, #tpu.memory_space<vmem>>, vector<64x24xf32>
    %c0_1 = arith.constant 0 : index
    %c0_2 = arith.constant 0 : index
    %1 = vector.load %arg2[%c0_1, %c0_2] : memref<24x24xf32, #tpu.memory_space<vmem>>, vector<24x24xf32>
    %cst = arith.constant dense<0.000000e+00> : vector<64x24xf32>
    %2 = tpu.matmul %0, %1, %cst {dimension_numbers = #tpu.dot_dimension_numbers<[1], [0], [0], [1], [0, 0, 1, 1], [], []>} : vector<64x24xf32>, vector<24x24xf32>, vector<64x24xf32> -> vector<64x24xf32>
    %3 = vector.extract_strided_slice %2 {offsets = [0, 0], sizes = [64, 8], strides = [1, 1]} : vector<64x24xf32> to vector<64x8xf32>
    %4 = vector.shape_cast %3 : vector<64x8xf32> to vector<8x8x8xf32>
    %5 = vector.extract_strided_slice %2 {offsets = [0, 8], sizes = [64, 8], strides = [1, 1]} : vector<64x24xf32> to vector<64x8xf32>
    %6 = vector.shape_cast %5 : vector<64x8xf32> to vector<8x8x8xf32>
    %7 = vector.extract_strided_slice %2 {offsets = [0, 16], sizes = [64, 8], strides = [1, 1]} : vector<64x24xf32> to vector<64x8xf32>
    %8 = vector.shape_cast %7 : vector<64x8xf32> to vector<8x8x8xf32>
    "tpu.trace_start"() <{level = 10 : i32, message = "bqd,bkd->bqk"}> : () -> ()
    %cst_3 = arith.constant dense<0.000000e+00> : vector<8x8x8xf32>
    %9 = tpu.matmul %4, %6, %cst_3 {dimension_numbers = #tpu.dot_dimension_numbers<[2], [2], [1], [1], [0, 0, 0, 1, 1, 1], [0], [0]>} : vector<8x8x8xf32>, vector<8x8x8xf32>, vector<8x8x8xf32> -> vector<8x8x8xf32>
    "tpu.trace_stop"() : () -> ()
    %cst_4 = arith.constant 0.353553385 : f32
    %10 = vector.broadcast %cst_4 : f32 to vector<8x8x8xf32>
    %11 = arith.mulf %9, %10 : vector<8x8x8xf32>
    %cst_5 = arith.constant dense<0xFF800000> : vector<8x8xf32>
    %12 = vector.multi_reduction <maximumf>, %11, %cst_5 [2] : vector<8x8x8xf32> to vector<8x8xf32>
    %13 = vector.shape_cast %12 : vector<8x8xf32> to vector<8x8x1xf32>
    %14 = vector.broadcast %13 : vector<8x8x1xf32> to vector<8x8x8xf32>
    %15 = arith.subf %11, %14 : vector<8x8x8xf32>
    %16 = math.exp %15 : vector<8x8x8xf32>
    %cst_6 = arith.constant dense<0.000000e+00> : vector<8x8xf32>
    %17 = vector.multi_reduction <add>, %16, %cst_6 [2] : vector<8x8x8xf32> to vector<8x8xf32>
    %18 = vector.shape_cast %17 : vector<8x8xf32> to vector<8x8x1xf32>
    %19 = vector.broadcast %18 : vector<8x8x1xf32> to vector<8x8x8xf32>
    %20 = arith.divf %16, %19 : vector<8x8x8xf32>
    "tpu.trace_start"() <{level = 10 : i32, message = "bqk,bkd->bqd"}> : () -> ()
    %cst_7 = arith.constant dense<0.000000e+00> : vector<8x8x8xf32>
    %21 = tpu.matmul %20, %8, %cst_7 {dimension_numbers = #tpu.dot_dimension_numbers<[2], [1], [1], [2], [0, 0, 0, 1, 1, 2], [0], [0]>} : vector<8x8x8xf32>, vector<8x8x8xf32>, vector<8x8x8xf32> -> vector<8x8x8xf32>
    "tpu.trace_stop"() : () -> ()
    %22 = vector.shape_cast %21 : vector<8x8x8xf32> to vector<2x4x8x8xf32>
    %23 = vector.extract_strided_slice %22 {offsets = [0, 0, 0, 0], sizes = [2, 1, 8, 8], strides = [1, 1, 1, 1]} : vector<2x4x8x8xf32> to vector<2x1x8x8xf32>
    %24 = vector.shape_cast %23 : vector<2x1x8x8xf32> to vector<2x8x8xf32>
    %25 = vector.extract_strided_slice %22 {offsets = [0, 1, 0, 0], sizes = [2, 1, 8, 8], strides = [1, 1, 1, 1]} : vector<2x4x8x8xf32> to vector<2x1x8x8xf32>
    %26 = vector.shape_cast %25 : vector<2x1x8x8xf32> to vector<2x8x8xf32>
    %27 = vector.extract_strided_slice %22 {offsets = [0, 2, 0, 0], sizes = [2, 1, 8, 8], strides = [1, 1, 1, 1]} : vector<2x4x8x8xf32> to vector<2x1x8x8xf32>
    %28 = vector.shape_cast %27 : vector<2x1x8x8xf32> to vector<2x8x8xf32>
    %29 = vector.extract_strided_slice %22 {offsets = [0, 3, 0, 0], sizes = [2, 1, 8, 8], strides = [1, 1, 1, 1]} : vector<2x4x8x8xf32> to vector<2x1x8x8xf32>
    %30 = vector.shape_cast %29 : vector<2x1x8x8xf32> to vector<2x8x8xf32>
    %31 = tpu.concatenate %24, %26, %28, %30 in 2 : vector<2x8x8xf32>, vector<2x8x8xf32>, vector<2x8x8xf32>, vector<2x8x8xf32> -> vector<2x8x32xf32>
    %32 = vector.shape_cast %31 : vector<2x8x32xf32> to vector<16x32xf32>
    %c0_8 = arith.constant 0 : index
    %c0_9 = arith.constant 0 : index
    %33 = vector.load %arg4[%c0_8, %c0_9] : memref<3x32xf32, #tpu.memory_space<vmem>>, vector<3x32xf32>
    %34 = vector.extract_strided_slice %33 {offsets = [0, 0], sizes = [1, 32], strides = [1, 1]} : vector<3x32xf32> to vector<1x32xf32>
    %35 = vector.extract_strided_slice %33 {offsets = [1, 0], sizes = [1, 32], strides = [1, 1]} : vector<3x32xf32> to vector<1x32xf32>
    %36 = vector.extract_strided_slice %33 {offsets = [2, 0], sizes = [1, 32], strides = [1, 1]} : vector<3x32xf32> to vector<1x32xf32>
    %c0_10 = arith.constant 0 : index
    %c0_11 = arith.constant 0 : index
    %37 = vector.load %arg1[%c0_10, %c0_11] : memref<16x32xf32, #tpu.memory_space<vmem>>, vector<16x32xf32>
    %38 = vector.broadcast %34 : vector<1x32xf32> to vector<16x32xf32>
    %39 = arith.addf %37, %38 : vector<16x32xf32>
    %c0_12 = arith.constant 0 : index
    %c0_13 = arith.constant 0 : index
    %40 = vector.load %arg3[%c0_12, %c0_13] : memref<32x32xf32, #tpu.memory_space<vmem>>, vector<32x32xf32>
    %cst_14 = arith.constant dense<0.000000e+00> : vector<16x32xf32>
    %41 = tpu.matmul %32, %40, %cst_14 {dimension_numbers = #tpu.dot_dimension_numbers<[1], [0], [0], [1], [0, 0, 1, 1], [], []>} : vector<16x32xf32>, vector<32x32xf32>, vector<16x32xf32> -> vector<16x32xf32>
    %42 = arith.addf %39, %41 : vector<16x32xf32>
    %cst_15 = arith.constant dense<0.000000e+00> : vector<16xf32>
    %43 = vector.multi_reduction <add>, %42, %cst_15 [1] : vector<16x32xf32> to vector<16xf32>
    %44 = vector.shape_cast %43 : vector<16xf32> to vector<16x1xf32>
    %cst_16 = arith.constant 3.200000e+01 : f32
    %45 = vector.broadcast %cst_16 : f32 to vector<16x1xf32>
    %46 = arith.divf %44, %45 : vector<16x1xf32>
    %47 = vector.broadcast %46 : vector<16x1xf32> to vector<16x32xf32>
    %48 = arith.subf %42, %47 : vector<16x32xf32>
    %49 = arith.mulf %48, %48 : vector<16x32xf32>
    %cst_17 = arith.constant dense<0.000000e+00> : vector<16xf32>
    %50 = vector.multi_reduction <add>, %49, %cst_17 [1] : vector<16x32xf32> to vector<16xf32>
    %51 = vector.shape_cast %50 : vector<16xf32> to vector<16x1xf32>
    %cst_18 = arith.constant 3.200000e+01 : f32
    %52 = vector.broadcast %cst_18 : f32 to vector<16x1xf32>
    %53 = arith.divf %51, %52 : vector<16x1xf32>
    %54 = vector.broadcast %46 : vector<16x1xf32> to vector<16x32xf32>
    %55 = arith.subf %42, %54 : vector<16x32xf32>
    %cst_19 = arith.constant 9.99999974E-6 : f32
    %56 = vector.broadcast %cst_19 : f32 to vector<16x1xf32>
    %57 = arith.addf %53, %56 : vector<16x1xf32>
    %58 = math.rsqrt %57 : vector<16x1xf32>
    %59 = vector.broadcast %58 : vector<16x1xf32> to vector<16x32xf32>
    %60 = arith.mulf %55, %59 : vector<16x32xf32>
    %61 = vector.broadcast %35 : vector<1x32xf32> to vector<16x32xf32>
    %62 = arith.mulf %60, %61 : vector<16x32xf32>
    %63 = vector.broadcast %36 : vector<1x32xf32> to vector<16x32xf32>
    %64 = arith.addf %62, %63 : vector<16x32xf32>
    %c0_20 = arith.constant 0 : index
    %c0_21 = arith.constant 0 : index
    %65 = vector.load %arg5[%c0_20, %c0_21] : memref<16x32xf32, #tpu.memory_space<vmem>>, vector<16x32xf32>
    tpu.vector_store %arg5[%c0_20, %c0_21], %64 {strides = array<i32>} : memref<16x32xf32, #tpu.memory_space<vmem>>, vector<16x32xf32>,
    return
  }
}

</mosaic_0001>

<llo_original>
// kernel: self_attention_forward.1
$region0: #{self_attention_forward.1}
  #allocation0 [shape = 'u32[]', space=smem, size = 0x4, offset = 0x4, fixed_abs, tag = 'smem constant byte address 0x4 - core index']
  #allocation1 [shape = 'u32[144,128]{1,0:T(1,128)}', space=vmem, size = 0x12000, scoped, tag = 'internal scratch']
  %s0 = inlined_call_operand.vmem [shape: f32[64,24], index: 0, kind: input, shape index: {}]
  %s1 = inlined_call_operand.vmem [shape: f32[16,32], index: 1, kind: input, shape index: {}]
  %s2 = inlined_call_operand.vmem [shape: f32[24,24], index: 2, kind: input, shape index: {}]
  %s3 = inlined_call_operand.vmem [shape: f32[32,32], index: 3, kind: input, shape index: {}]
  %s4 = inlined_call_operand.vmem [shape: f32[3,32], index: 4, kind: input, shape index: {}]
  %s5 = inlined_call_operand.hbm [shape: f32[16,32], index: 5, kind: output, shape index: {}]
  %s6 = sld [smem:[#allocation0]]
  $region30: #{self_attention_forward.1} parent=0
    _
  %s8 = ssub.s32 1, %s6
  %s9 = scalar_select 0, %s8, %s6
  $region1: #{self_attention_forward.1} parent=0
    #allocation2 [shape = 'u8[8192]{0}', space=vmem, size = 0x2000, scoped, tag = 'output window, operand 0, single buffered']
    #allocation3 [shape = 's32[1]{0}', space=sflag, size = 0x4, scoped, tag = 'scoped memory for self_attention_forward.1']
    %10 = vsyncpa [#allocation3], 0
    // Predicated region
    $region2: #{self_attention_forward.1} parent=1 // pred_check
      _
    $region3: #{self_attention_forward.1} parent=1 // pred_check_branch
      %12 = sbr.rel (0) target = $region5
    $region4: #{self_attention_forward.1} parent=1 // pred_region
      _
    $region5: #{self_attention_forward.1} parent=1 // pred_fallthru
      _
    // Predicated region
    $region6: #{self_attention_forward.1} parent=1 // pred_check
      _
    $region7: #{self_attention_forward.1} parent=1 // pred_check_branch
      %14 = sbr.rel (0) target = $region9
    $region8: #{self_attention_forward.1} parent=1 // pred_region
      _
    $region9: #{self_attention_forward.1} parent=1 // pred_fallthru
      _
    // Predicated region
    $region10: #{self_attention_forward.1} parent=1 // pred_check
      _
    $region11: #{self_attention_forward.1} parent=1 // pred_check_branch
      %16 = sbr.rel (0) target = $region13
    $region12: #{self_attention_forward.1} parent=1 // pred_region
      _
    $region13: #{self_attention_forward.1} parent=1 // pred_fallthru
      _
    // Predicated region
    $region14: #{self_attention_forward.1} parent=1 // pred_check
      _
    $region15: #{self_attention_forward.1} parent=1 // pred_check_branch
      %18 = sbr.rel (0) target = $region17
    $region16: #{self_attention_forward.1} parent=1 // pred_region
      _
    $region17: #{self_attention_forward.1} parent=1 // pred_fallthru
      _
    // Predicated region
    $region18: #{self_attention_forward.1} parent=1 // pred_check
      _
    $region19: #{self_attention_forward.1} parent=1 // pred_check_branch
      %20 = sbr.rel (0) target = $region21
    $region20: #{self_attention_forward.1} parent=1 // pred_region
      _
    $region21: #{self_attention_forward.1} parent=1 // pred_fallthru
      _
    %v21 = vld [vmem:[%s0] sm:$0xff]
    %v22 = vld [vmem:[%s0 + $0x8] sm:$0xff]
    %v23 = vld [vmem:[%s0 + $0x10] sm:$0xff]
    %v24 = vld [vmem:[%s0 + $0x18] sm:$0xff]
    %v25 = vld [vmem:[%s0 + $0x20] sm:$0xff]
    %v26 = vld [vmem:[%s0 + $0x28] sm:$0xff]
    %v27 = vld [vmem:[%s0 + $0x30] sm:$0xff]
    %v28 = vld [vmem:[%s0 + $0x38] sm:$0xff]
    %v29 = vld [vmem:[%s2] sm:$0xff]
    %v30 = vld [vmem:[%s2 + $0x8] sm:$0xff]
    %v31 = vld [vmem:[%s2 + $0x10] sm:$0xff]
    %vm32 = vcmask 195584
    %v34 = vsel %vm32, %v21, 0
    %v37 = vsel %vm32, %v22, 0
    %v40 = vsel %vm32, %v23, 0
    %v43 = vsel %vm32, %v24, 0
    %v46 = vsel %vm32, %v25, 0
    %v49 = vsel %vm32, %v26, 0
    %v52 = vsel %vm32, %v27, 0
    %v55 = vsel %vm32, %v28, 0
    %57 = vmatprep.subr.mxu0 0.0
    %58 = vmatpush1.msra.mxu0 %v29
    %59 = vmatprep.subr.mxu0 0.0
    %60 = vmatpush1.msra.mxu0 %v30
    %61 = vmatprep.subr.mxu0 0.0
    %62 = vmatpush1.msra.mxu0 %v31
    %63 = vmatprep.subr.mxu0 0.0
    %64 = vmatpush1.msra.mxu0 0.0
    %65 = vmatprep.subr.mxu0 0.0
    %66 = vmatpush1.msra.mxu0 0.0
    %67 = vmatprep.subr.mxu0 0.0
    %68 = vmatpush1.msra.mxu0 0.0
    %69 = vmatprep.subr.mxu0 0.0
    %70 = vmatpush1.msra.mxu0 0.0
    %71 = vmatprep.subr.mxu0 0.0
    %72 = vmatpush1.msra.mxu0 0.0
    %73 = vmatprep.subr.mxu0 0.0
    %74 = vmatpush1.msra.mxu0 0.0
    %75 = vmatprep.subr.mxu0 0.0
    %76 = vmatpush1.msra.mxu0 0.0
    %77 = vmatprep.subr.mxu0 0.0
    %78 = vmatpush1.msra.mxu0 0.0
    %79 = vmatprep.subr.mxu0 0.0
    %80 = vmatpush1.msra.mxu0 0.0
    %81 = vmatprep.subr.mxu0 0.0
    %82 = vmatpush1.msra.mxu0 0.0
    %83 = vmatprep.subr.mxu0 0.0
    %84 = vmatpush1.msra.mxu0 0.0
    %85 = vmatprep.subr.mxu0 0.0
    %86 = vmatpush1.msra.mxu0 0.0
    %87 = vmatprep.subr.mxu0 0.0
    %88 = vmatpush1.msra.mxu0 0.0
    %89 = vmatprep.subr.mxu0 0.0
    %90 = vmatpush1.msra.mxu0 0.0
    %91 = vmatprep.subr.mxu0 0.0
    %92 = vmatpush1.msra.mxu0 0.0
    %93 = vmatprep.subr.mxu0 0.0
    %94 = vmatpush1.msra.mxu0 0.0
    %95 = vmatprep.subr.mxu0 0.0
    %96 = vmatpush1.msra.mxu0 0.0
    %97 = vmatprep.subr.mxu0 0.0
    %98 = vmatpush1.msra.mxu0 0.0
    %99 = vmatprep.subr.mxu0 0.0
    %100 = vmatpush1.msra.mxu0 0.0
    %101 = vmatprep.subr.mxu0 0.0
    %102 = vmatpush1.msra.mxu0 0.0
    %103 = vmatprep.subr.mxu0 0.0
    %104 = vmatpush1.msra.mxu0 0.0
    %105 = vmatprep.subr.mxu0 0.0
    %106 = vmatpush1.msra.mxu0 0.0
    %107 = vmatprep.subr.mxu0 0.0
    %108 = vmatpush1.msra.mxu0 0.0
    %109 = vmatprep.subr.mxu0 0.0
    %110 = vmatpush1.msra.mxu0 0.0
    %111 = vmatprep.subr.mxu0 0.0
    %112 = vmatpush1.msra.mxu0 0.0
    %113 = vmatprep.subr.mxu0 0.0
    %114 = vmatpush1.msra.mxu0 0.0
    %115 = vmatprep.subr.mxu0 0.0
    %116 = vmatpush1.msra.mxu0 0.0
    %117 = vmatprep.subr.mxu0 0.0
    %118 = vmatpush1.msra.mxu0 0.0
    %119 = vmatprep.subr.mxu0 0.0
    %120 = vmatpush1.msra.mxu0 0.0
    %121 = vmatprep.mubr.f32.mxu0 0.0
    %122 = vmatmul.mubr.f32.gmra.mrb[0].mxu0 %v34
    %v123 = vpop.f32.mrb[0].mxu0
    %v124 = vadd.f32 0.0, %v123
    %v125 = vpop.f32.mrb[0].mxu0
    %126 = vmatprep.mubr.f32.mxu0 0.0
    %127 = vmatmul.mubr.f32.gmra.mrb[0].mxu0 %v37
    %v128 = vpop.f32.mrb[0].mxu0
    %v129 = vadd.f32 0.0, %v128
    %v130 = vpop.f32.mrb[0].mxu0
    %131 = vmatprep.mubr.f32.mxu0 0.0
    %132 = vmatmul.mubr.f32.gmra.mrb[0].mxu0 %v40
    %v133 = vpop.f32.mrb[0].mxu0
    %v134 = vadd.f32 0.0, %v133
    %v135 = vpop.f32.mrb[0].mxu0
    %136 = vmatprep.mubr.f32.mxu0 0.0
    %137 = vmatmul.mubr.f32.gmra.mrb[0].mxu0 %v43
    %v138 = vpop.f32.mrb[0].mxu0
    %v139 = vadd.f32 0.0, %v138
    %v140 = vpop.f32.mrb[0].mxu0
    %141 = vmatprep.mubr.f32.mxu0 0.0
    %142 = vmatmul.mubr.f32.gmra.mrb[0].mxu0 %v46
    %v143 = vpop.f32.mrb[0].mxu0
    %v144 = vadd.f32 0.0, %v143
    %v145 = vpop.f32.mrb[0].mxu0
    %146 = vmatprep.mubr.f32.mxu0 0.0
    %147 = vmatmul.mubr.f32.gmra.mrb[0].mxu0 %v49
    %v148 = vpop.f32.mrb[0].mxu0
    %v149 = vadd.f32 0.0, %v148
    %v150 = vpop.f32.mrb[0].mxu0
    %151 = vmatprep.mubr.f32.mxu0 0.0
    %152 = vmatmul.mubr.f32.gmra.mrb[0].mxu0 %v52
    %v153 = vpop.f32.mrb[0].mxu0
    %v154 = vadd.f32 0.0, %v153
    %v155 = vpop.f32.mrb[0].mxu0
    %156 = vmatprep.mubr.f32.mxu0 0.0
    %157 = vmatmul.mubr.f32.gmra.mrb[0].mxu0 %v55
    %v158 = vpop.f32.mrb[0].mxu0
    %v159 = vadd.f32 0.0, %v158
    %v160 = vpop.f32.mrb[0].mxu0
    %161 = vdwg.mxu0
    %163 = vrot.lane.b32.xlu0 %v124, 120
    %v164 = vpop.permute.xlu0 %163
    %vm165 = vcmask 64512
    %v166 = vsel %vm165, %v124, 0
    %v168 = vsel %vm165, %v164, 0
    %170 = vmatprep.subr.mxu0 0.0
    %171 = vmatpush1.xpose.msra.mxu0 %v168
    %172 = vmatprep.subr.mxu0 0.0
    %173 = vmatpush1.xpose.msra.mxu0 0.0
    %174 = vmatprep.subr.mxu0 0.0
    %175 = vmatpush1.xpose.msra.mxu0 0.0
    %176 = vmatprep.subr.mxu0 0.0
    %177 = vmatpush1.xpose.msra.mxu0 0.0
    %178 = vmatprep.subr.mxu0 0.0
    %179 = vmatpush1.xpose.msra.mxu0 0.0
    %180 = vmatprep.subr.mxu0 0.0
    %181 = vmatpush1.xpose.msra.mxu0 0.0
    %182 = vmatprep.subr.mxu0 0.0
    %183 = vmatpush1.xpose.msra.mxu0 0.0
    %184 = vmatprep.subr.mxu0 0.0
    %185 = vmatpush1.xpose.msra.mxu0 0.0
    %186 = vmatprep.subr.mxu0 0.0
    %187 = vmatpush1.xpose.msra.mxu0 0.0
    %188 = vmatprep.subr.mxu0 0.0
    %189 = vmatpush1.xpose.msra.mxu0 0.0
    %190 = vmatprep.subr.mxu0 0.0
    %191 = vmatpush1.xpose.msra.mxu0 0.0
    %192 = vmatprep.subr.mxu0 0.0
    %193 = vmatpush1.xpose.msra.mxu0 0.0
    %194 = vmatprep.subr.mxu0 0.0
    %195 = vmatpush1.xpose.msra.mxu0 0.0
    %196 = vmatprep.subr.mxu0 0.0
    %197 = vmatpush1.xpose.msra.mxu0 0.0
    %198 = vmatprep.subr.mxu0 0.0
    %199 = vmatpush1.xpose.msra.mxu0 0.0
    %200 = vmatprep.subr.mxu0 0.0
    %201 = vmatpush1.xpose.msra.mxu0 0.0
    %202 = vmatprep.subr.mxu0 0.0
    %203 = vmatpush1.xpose.msra.mxu0 0.0
    %204 = vmatprep.subr.mxu0 0.0
    %205 = vmatpush1.xpose.msra.mxu0 0.0
    %206 = vmatprep.subr.mxu0 0.0
    %207 = vmatpush1.xpose.msra.mxu0 0.0
    %208 = vmatprep.subr.mxu0 0.0
    %209 = vmatpush1.xpose.msra.mxu0 0.0
    %210 = vmatprep.subr.mxu0 0.0
    %211 = vmatpush1.xpose.msra.mxu0 0.0
    %212 = vmatprep.subr.mxu0 0.0
    %213 = vmatpush1.xpose.msra.mxu0 0.0
    %214 = vmatprep.subr.mxu0 0.0
    %215 = vmatpush1.xpose.msra.mxu0 0.0
    %216 = vmatprep.subr.mxu0 0.0
    %217 = vmatpush1.xpose.msra.mxu0 0.0
    %218 = vmatprep.subr.mxu0 0.0
    %219 = vmatpush1.xpose.msra.mxu0 0.0
    %220 = vmatprep.subr.mxu0 0.0
    %221 = vmatpush1.xpose.msra.mxu0 0.0
    %222 = vmatprep.subr.mxu0 0.0
    %223 = vmatpush1.xpose.msra.mxu0 0.0
    %224 = vmatprep.subr.mxu0 0.0
    %225 = vmatpush1.xpose.msra.mxu0 0.0
    %226 = vmatprep.subr.mxu0 0.0
    %227 = vmatpush1.xpose.msra.mxu0 0.0
    %228 = vmatprep.subr.mxu0 0.0
    %229 = vmatpush1.xpose.msra.mxu0 0.0
    %230 = vmatprep.subr.mxu0 0.0
    %231 = vmatpush1.xpose.msra.mxu0 0.0
    %232 = vmatprep.subr.mxu0 0.0
    %233 = vmatpush1.xpose.msra.mxu0 0.0
    %234 = vmatprep.mubr.f32.mxu0 0.0
    %235 = vmatmul.mubr.f32.gmra.mrb[0].mxu0 %v166
    %v236 = vpop.f32.mrb[0].mxu0
    %v237 = vadd.f32 0.0, %v236
    %v238 = vpop.f32.mrb[0].mxu0
    %239 = vdwg.mxu0
    %241 = vrot.lane.b32.xlu0 %v129, 120
    %v242 = vpop.permute.xlu0 %241
    %v243 = vsel %vm165, %v129, 0
    %v245 = vsel %vm165, %v242, 0
    %247 = vmatprep.subr.mxu0 0.0
    %248 = vmatpush1.xpose.msra.mxu0 %v245
    %249 = vmatprep.subr.mxu0 0.0
    %250 = vmatpush1.xpose.msra.mxu0 0.0
    %251 = vmatprep.subr.mxu0 0.0
    %252 = vmatpush1.xpose.msra.mxu0 0.0
    %253 = vmatprep.subr.mxu0 0.0
    %254 = vmatpush1.xpose.msra.mxu0 0.0
    %255 = vmatprep.subr.mxu0 0.0
    %256 = vmatpush1.xpose.msra.mxu0 0.0
    %257 = vmatprep.subr.mxu0 0.0
    %258 = vmatpush1.xpose.msra.mxu0 0.0
    %259 = vmatprep.subr.mxu0 0.0
    %260 = vmatpush1.xpose.msra.mxu0 0.0
    %261 = vmatprep.subr.mxu0 0.0
    %262 = vmatpush1.xpose.msra.mxu0 0.0
    %263 = vmatprep.subr.mxu0 0.0
    %264 = vmatpush1.xpose.msra.mxu0 0.0
    %265 = vmatprep.subr.mxu0 0.0
    %266 = vmatpush1.xpose.msra.mxu0 0.0
    %267 = vmatprep.subr.mxu0 0.0
    %268 = vmatpush1.xpose.msra.mxu0 0.0
    %269 = vmatprep.subr.mxu0 0.0
    %270 = vmatpush1.xpose.msra.mxu0 0.0
    %271 = vmatprep.subr.mxu0 0.0
    %272 = vmatpush1.xpose.msra.mxu0 0.0
    %273 = vmatprep.subr.mxu0 0.0
    %274 = vmatpush1.xpose.msra.mxu0 0.0
    %275 = vmatprep.subr.mxu0 0.0
    %276 = vmatpush1.xpose.msra.mxu0 0.0
    %277 = vmatprep.subr.mxu0 0.0
    %278 = vmatpush1.xpose.msra.mxu0 0.0
    %279 = vmatprep.subr.mxu0 0.0
    %280 = vmatpush1.xpose.msra.mxu0 0.0
    %281 = vmatprep.subr.mxu0 0.0
    %282 = vmatpush1.xpose.msra.mxu0 0.0
    %283 = vmatprep.subr.mxu0 0.0
    %284 = vmatpush1.xpose.msra.mxu0 0.0
    %285 = vmatprep.subr.mxu0 0.0
    %286 = vmatpush1.xpose.msra.mxu0 0.0
    %287 = vmatprep.subr.mxu0 0.0
    %288 = vmatpush1.xpose.msra.mxu0 0.0
    %289 = vmatprep.subr.mxu0 0.0
    %290 = vmatpush1.xpose.msra.mxu0 0.0
    %291 = vmatprep.subr.mxu0 0.0
    %292 = vmatpush1.xpose.msra.mxu0 0.0
    %293 = vmatprep.subr.mxu0 0.0
    %294 = vmatpush1.xpose.msra.mxu0 0.0
    %295 = vmatprep.subr.mxu0 0.0
    %296 = vmatpush1.xpose.msra.mxu0 0.0
    %297 = vmatprep.subr.mxu0 0.0
    %298 = vmatpush1.xpose.msra.mxu0 0.0
    %299 = vmatprep.subr.mxu0 0.0
    %300 = vmatpush1.xpose.msra.mxu0 0.0
    %301 = vmatprep.subr.mxu0 0.0
    %302 = vmatpush1.xpose.msra.mxu0 0.0
    %303 = vmatprep.subr.mxu0 0.0
    %304 = vmatpush1.xpose.msra.mxu0 0.0
    %305 = vmatprep.subr.mxu0 0.0
    %306 = vmatpush1.xpose.msra.mxu0 0.0
    %307 = vmatprep.subr.mxu0 0.0
    %308 = vmatpush1.xpose.msra.mxu0 0.0
    %309 = vmatprep.subr.mxu0 0.0
    %310 = vmatpush1.xpose.msra.mxu0 0.0
    %311 = vmatprep.mubr.f32.mxu0 0.0
    %312 = vmatmul.mubr.f32.gmra.mrb[0].mxu0 %v243
    %v313 = vpop.f32.mrb[0].mxu0
    %v314 = vadd.f32 0.0, %v313
    %v315 = vpop.f32.mrb[0].mxu0
    %316 = vdwg.mxu0
    %318 = vrot.lane.b32.xlu0 %v134, 120
    %v319 = vpop.permute.xlu0 %318
    %v320 = vsel %vm165, %v134, 0
    %v322 = vsel %vm165, %v319, 0
    %324 = vmatprep.subr.mxu0 0.0
    %325 = vmatpush1.xpose.msra.mxu0 %v322
    %326 = vmatprep.subr.mxu0 0.0
    %327 = vmatpush1.xpose.msra.mxu0 0.0
    %328 = vmatprep.subr.mxu0 0.0
    %329 = vmatpush1.xpose.msra.mxu0 0.0
    %330 = vmatprep.subr.mxu0 0.0
    %331 = vmatpush1.xpose.msra.mxu0 0.0
    %332 = vmatprep.subr.mxu0 0.0
    %333 = vmatpush1.xpose.msra.mxu0 0.0
    %334 = vmatprep.subr.mxu0 0.0
    %335 = vmatpush1.xpose.msra.mxu0 0.0
    %336 = vmatprep.subr.mxu0 0.0
    %337 = vmatpush1.xpose.msra.mxu0 0.0
    %338 = vmatprep.subr.mxu0 0.0
    %339 = vmatpush1.xpose.msra.mxu0 0.0
    %340 = vmatprep.subr.mxu0 0.0
    %341 = vmatpush1.xpose.msra.mxu0 0.0
    %342 = vmatprep.subr.mxu0 0.0
    %343 = vmatpush1.xpose.msra.mxu0 0.0
    %344 = vmatprep.subr.mxu0 0.0
    %345 = vmatpush1.xpose.msra.mxu0 0.0
    %346 = vmatprep.subr.mxu0 0.0
    %347 = vmatpush1.xpose.msra.mxu0 0.0
    %348 = vmatprep.subr.mxu0 0.0
    %349 = vmatpush1.xpose.msra.mxu0 0.0
    %350 = vmatprep.subr.mxu0 0.0
    %351 = vmatpush1.xpose.msra.mxu0 0.0
    %352 = vmatprep.subr.mxu0 0.0
    %353 = vmatpush1.xpose.msra.mxu0 0.0
    %354 = vmatprep.subr.mxu0 0.0
    %355 = vmatpush1.xpose.msra.mxu0 0.0
    %356 = vmatprep.subr.mxu0 0.0
    %357 = vmatpush1.xpose.msra.mxu0 0.0
    %358 = vmatprep.subr.mxu0 0.0
    %359 = vmatpush1.xpose.msra.mxu0 0.0
    %360 = vmatprep.subr.mxu0 0.0
    %361 = vmatpush1.xpose.msra.mxu0 0.0
    %362 = vmatprep.subr.mxu0 0.0
    %363 = vmatpush1.xpose.msra.mxu0 0.0
    %364 = vmatprep.subr.mxu0 0.0
    %365 = vmatpush1.xpose.msra.mxu0 0.0
    %366 = vmatprep.subr.mxu0 0.0
    %367 = vmatpush1.xpose.msra.mxu0 0.0
    %368 = vmatprep.subr.mxu0 0.0
    %369 = vmatpush1.xpose.msra.mxu0 0.0
    %370 = vmatprep.subr.mxu0 0.0
    %371 = vmatpush1.xpose.msra.mxu0 0.0
    %372 = vmatprep.subr.mxu0 0.0
    %373 = vmatpush1.xpose.msra.mxu0 0.0
    %374 = vmatprep.subr.mxu0 0.0
    %375 = vmatpush1.xpose.msra.mxu0 0.0
    %376 = vmatprep.subr.mxu0 0.0
    %377 = vmatpush1.xpose.msra.mxu0 0.0
    %378 = vmatprep.subr.mxu0 0.0
    %379 = vmatpush1.xpose.msra.mxu0 0.0
    %380 = vmatprep.subr.mxu0 0.0
    %381 = vmatpush1.xpose.msra.mxu0 0.0
    %382 = vmatprep.subr.mxu0 0.0
    %383 = vmatpush1.xpose.msra.mxu0 0.0
    %384 = vmatprep.subr.mxu0 0.0
    %385 = vmatpush1.xpose.msra.mxu0 0.0
    %386 = vmatprep.subr.mxu0 0.0
    %387 = vmatpush1.xpose.msra.mxu0 0.0
    %388 = vmatprep.mubr.f32.mxu0 0.0
    %389 = vmatmul.mubr.f32.gmra.mrb[0].mxu0 %v320
    %v390 = vpop.f32.mrb[0].mxu0
    %v391 = vadd.f32 0.0, %v390
    %v392 = vpop.f32.mrb[0].mxu0
    %393 = vdwg.mxu0
    %395 = vrot.lane.b32.xlu0 %v139, 120
    %v396 = vpop.permute.xlu0 %395
    %v397 = vsel %vm165, %v139, 0
    %v399 = vsel %vm165, %v396, 0
    %401 = vmatprep.subr.mxu0 0.0
    %402 = vmatpush1.xpose.msra.mxu0 %v399
    %403 = vmatprep.subr.mxu0 0.0
    %404 = vmatpush1.xpose.msra.mxu0 0.0
    %405 = vmatprep.subr.mxu0 0.0
    %406 = vmatpush1.xpose.msra.mxu0 0.0
    %407 = vmatprep.subr.mxu0 0.0
    %408 = vmatpush1.xpose.msra.mxu0 0.0
    %409 = vmatprep.subr.mxu0 0.0
    %410 = vmatpush1.xpose.msra.mxu0 0.0
    %411 = vmatprep.subr.mxu0 0.0
    %412 = vmatpush1.xpose.msra.mxu0 0.0
    %413 = vmatprep.subr.mxu0 0.0
    %414 = vmatpush1.xpose.msra.mxu0 0.0
    %415 = vmatprep.subr.mxu0 0.0
    %416 = vmatpush1.xpose.msra.mxu0 0.0
    %417 = vmatprep.subr.mxu0 0.0
    %418 = vmatpush1.xpose.msra.mxu0 0.0
    %419 = vmatprep.subr.mxu0 0.0
    %420 = vmatpush1.xpose.msra.mxu0 0.0
    %421 = vmatprep.subr.mxu0 0.0
    %422 = vmatpush1.xpose.msra.mxu0 0.0
    %423 = vmatprep.subr.mxu0 0.0
    %424 = vmatpush1.xpose.msra.mxu0 0.0
    %425 = vmatprep.subr.mxu0 0.0
    %426 = vmatpush1.xpose.msra.mxu0 0.0
    %427 = vmatprep.subr.mxu0 0.0
    %428 = vmatpush1.xpose.msra.mxu0 0.0
    %429 = vmatprep.subr.mxu0 0.0
    %430 = vmatpush1.xpose.msra.mxu0 0.0
    %431 = vmatprep.subr.mxu0 0.0
    %432 = vmatpush1.xpose.msra.mxu0 0.0
    %433 = vmatprep.subr.mxu0 0.0
    %434 = vmatpush1.xpose.msra.mxu0 0.0
    %435 = vmatprep.subr.mxu0 0.0
    %436 = vmatpush1.xpose.msra.mxu0 0.0
    %437 = vmatprep.subr.mxu0 0.0
    %438 = vmatpush1.xpose.msra.mxu0 0.0
    %439 = vmatprep.subr.mxu0 0.0
    %440 = vmatpush1.xpose.msra.mxu0 0.0
    %441 = vmatprep.subr.mxu0 0.0
    %442 = vmatpush1.xpose.msra.mxu0 0.0
    %443 = vmatprep.subr.mxu0 0.0
    %444 = vmatpush1.xpose.msra.mxu0 0.0
    %445 = vmatprep.subr.mxu0 0.0
    %446 = vmatpush1.xpose.msra.mxu0 0.0
    %447 = vmatprep.subr.mxu0 0.0
    %448 = vmatpush1.xpose.msra.mxu0 0.0
    %449 = vmatprep.subr.mxu0 0.0
    %450 = vmatpush1.xpose.msra.mxu0 0.0
    %451 = vmatprep.subr.mxu0 0.0
    %452 = vmatpush1.xpose.msra.mxu0 0.0
    %453 = vmatprep.subr.mxu0 0.0
    %454 = vmatpush1.xpose.msra.mxu0 0.0
    %455 = vmatprep.subr.mxu0 0.0
    %456 = vmatpush1.xpose.msra.mxu0 0.0
    %457 = vmatprep.subr.mxu0 0.0
    %458 = vmatpush1.xpose.msra.mxu0 0.0
    %459 = vmatprep.subr.mxu0 0.0
    %460 = vmatpush1.xpose.msra.mxu0 0.0
    %461 = vmatprep.subr.mxu0 0.0
    %462 = vmatpush1.xpose.msra.mxu0 0.0
    %463 = vmatprep.subr.mxu0 0.0
    %464 = vmatpush1.xpose.msra.mxu0 0.0
    %465 = vmatprep.mubr.f32.mxu0 0.0
    %466 = vmatmul.mubr.f32.gmra.mrb[0].mxu0 %v397
    %v467 = vpop.f32.mrb[0].mxu0
    %v468 = vadd.f32 0.0, %v467
    %v469 = vpop.f32.mrb[0].mxu0
    %470 = vdwg.mxu0
    %472 = vrot.lane.b32.xlu0 %v144, 120
    %v473 = vpop.permute.xlu0 %472
    %v474 = vsel %vm165, %v144, 0
    %v476 = vsel %vm165, %v473, 0
    %478 = vmatprep.subr.mxu0 0.0
    %479 = vmatpush1.xpose.msra.mxu0 %v476
    %480 = vmatprep.subr.mxu0 0.0
    %481 = vmatpush1.xpose.msra.mxu0 0.0
    %482 = vmatprep.subr.mxu0 0.0
    %483 = vmatpush1.xpose.msra.mxu0 0.0
    %484 = vmatprep.subr.mxu0 0.0
    %485 = vmatpush1.xpose.msra.mxu0 0.0
    %486 = vmatprep.subr.mxu0 0.0
    %487 = vmatpush1.xpose.msra.mxu0 0.0
    %488 = vmatprep.subr.mxu0 0.0
    %489 = vmatpush1.xpose.msra.mxu0 0.0
    %490 = vmatprep.subr.mxu0 0.0
    %491 = vmatpush1.xpose.msra.mxu0 0.0
    %492 = vmatprep.subr.mxu0 0.0
    %493 = vmatpush1.xpose.msra.mxu0 0.0
    %494 = vmatprep.subr.mxu0 0.0
    %495 = vmatpush1.xpose.msra.mxu0 0.0
    %496 = vmatprep.subr.mxu0 0.0
    %497 = vmatpush1.xpose.msra.mxu0 0.0
    %498 = vmatprep.subr.mxu0 0.0
    %499 = vmatpush1.xpose.msra.mxu0 0.0
    %500 = vmatprep.subr.mxu0 0.0
    %501 = vmatpush1.xpose.msra.mxu0 0.0
    %502 = vmatprep.subr.mxu0 0.0
    %503 = vmatpush1.xpose.msra.mxu0 0.0
    %504 = vmatprep.subr.mxu0 0.0
    %505 = vmatpush1.xpose.msra.mxu0 0.0
    %506 = vmatprep.subr.mxu0 0.0
    %507 = vmatpush1.xpose.msra.mxu0 0.0
    %508 = vmatprep.subr.mxu0 0.0
    %509 = vmatpush1.xpose.msra.mxu0 0.0
    %510 = vmatprep.subr.mxu0 0.0
    %511 = vmatpush1.xpose.msra.mxu0 0.0
    %512 = vmatprep.subr.mxu0 0.0
    %513 = vmatpush1.xpose.msra.mxu0 0.0
    %514 = vmatprep.subr.mxu0 0.0
    %515 = vmatpush1.xpose.msra.mxu0 0.0
    %516 = vmatprep.subr.mxu0 0.0
    %517 = vmatpush1.xpose.msra.mxu0 0.0
    %518 = vmatprep.subr.mxu0 0.0
    %519 = vmatpush1.xpose.msra.mxu0 0.0
    %520 = vmatprep.subr.mxu0 0.0
    %521 = vmatpush1.xpose.msra.mxu0 0.0
    %522 = vmatprep.subr.mxu0 0.0
    %523 = vmatpush1.xpose.msra.mxu0 0.0
    %524 = vmatprep.subr.mxu0 0.0
    %525 = vmatpush1.xpose.msra.mxu0 0.0
    %526 = vmatprep.subr.mxu0 0.0
    %527 = vmatpush1.xpose.msra.mxu0 0.0
    %528 = vmatprep.subr.mxu0 0.0
    %529 = vmatpush1.xpose.msra.mxu0 0.0
    %530 = vmatprep.subr.mxu0 0.0
    %531 = vmatpush1.xpose.msra.mxu0 0.0
    %532 = vmatprep.subr.mxu0 0.0
    %533 = vmatpush1.xpose.msra.mxu0 0.0
    %534 = vmatprep.subr.mxu0 0.0
    %535 = vmatpush1.xpose.msra.mxu0 0.0
    %536 = vmatprep.subr.mxu0 0.0
    %537 = vmatpush1.xpose.msra.mxu0 0.0
    %538 = vmatprep.subr.mxu0 0.0
    %539 = vmatpush1.xpose.msra.mxu0 0.0
    %540 = vmatprep.subr.mxu0 0.0
    %541 = vmatpush1.xpose.msra.mxu0 0.0
    %542 = vmatprep.mubr.f32.mxu0 0.0
    %543 = vmatmul.mubr.f32.gmra.mrb[0].mxu0 %v474
    %v544 = vpop.f32.mrb[0].mxu0
    %v545 = vadd.f32 0.0, %v544
    %v546 = vpop.f32.mrb[0].mxu0
    %547 = vdwg.mxu0
    %549 = vrot.lane.b32.xlu0 %v149, 120
    %v550 = vpop.permute.xlu0 %549
    %v551 = vsel %vm165, %v149, 0
    %v553 = vsel %vm165, %v550, 0
    %555 = vmatprep.subr.mxu0 0.0
    %556 = vmatpush1.xpose.msra.mxu0 %v553
    %557 = vmatprep.subr.mxu0 0.0
    %558 = vmatpush1.xpose.msra.mxu0 0.0
    %559 = vmatprep.subr.mxu0 0.0
    %560 = vmatpush1.xpose.msra.mxu0 0.0
    %561 = vmatprep.subr.mxu0 0.0
    %562 = vmatpush1.xpose.msra.mxu0 0.0
    %563 = vmatprep.subr.mxu0 0.0
    %564 = vmatpush1.xpose.msra.mxu0 0.0
    %565 = vmatprep.subr.mxu0 0.0
    %566 = vmatpush1.xpose.msra.mxu0 0.0
    %567 = vmatprep.subr.mxu0 0.0
    %568 = vmatpush1.xpose.msra.mxu0 0.0
    %569 = vmatprep.subr.mxu0 0.0
    %570 = vmatpush1.xpose.msra.mxu0 0.0
    %571 = vmatprep.subr.mxu0 0.0
    %572 = vmatpush1.xpose.msra.mxu0 0.0
    %573 = vmatprep.subr.mxu0 0.0
    %574 = vmatpush1.xpose.msra.mxu0 0.0
    %575 = vmatprep.subr.mxu0 0.0
    %576 = vmatpush1.xpose.msra.mxu0 0.0
    %577 = vmatprep.subr.mxu0 0.0
    %578 = vmatpush1.xpose.msra.mxu0 0.0
    %579 = vmatprep.subr.mxu0 0.0
    %580 = vmatpush1.xpose.msra.mxu0 0.0
    %581 = vmatprep.subr.mxu0 0.0
    %582 = vmatpush1.xpose.msra.mxu0 0.0
    %583 = vmatprep.subr.mxu0 0.0
    %584 = vmatpush1.xpose.msra.mxu0 0.0
    %585 = vmatprep.subr.mxu0 0.0
    %586 = vmatpush1.xpose.msra.mxu0 0.0
    %587 = vmatprep.subr.mxu0 0.0
    %588 = vmatpush1.xpose.msra.mxu0 0.0
    %589 = vmatprep.subr.mxu0 0.0
    %590 = vmatpush1.xpose.msra.mxu0 0.0
    %591 = vmatprep.subr.mxu0 0.0
    %592 = vmatpush1.xpose.msra.mxu0 0.0
    %593 = vmatprep.subr.mxu0 0.0
    %594 = vmatpush1.xpose.msra.mxu0 0.0
    %595 = vmatprep.subr.mxu0 0.0
    %596 = vmatpush1.xpose.msra.mxu0 0.0
    %597 = vmatprep.subr.mxu0 0.0
    %598 = vmatpush1.xpose.msra.mxu0 0.0
    %599 = vmatprep.subr.mxu0 0.0
    %600 = vmatpush1.xpose.msra.mxu0 0.0
    %601 = vmatprep.subr.mxu0 0.0
    %602 = vmatpush1.xpose.msra.mxu0 0.0
    %603 = vmatprep.subr.mxu0 0.0
    %604 = vmatpush1.xpose.msra.mxu0 0.0
    %605 = vmatprep.subr.mxu0 0.0
    %606 = vmatpush1.xpose.msra.mxu0 0.0
    %607 = vmatprep.subr.mxu0 0.0
    %608 = vmatpush1.xpose.msra.mxu0 0.0
    %609 = vmatprep.subr.mxu0 0.0
    %610 = vmatpush1.xpose.msra.mxu0 0.0
    %611 = vmatprep.subr.mxu0 0.0
    %612 = vmatpush1.xpose.msra.mxu0 0.0
    %613 = vmatprep.subr.mxu0 0.0
    %614 = vmatpush1.xpose.msra.mxu0 0.0
    %615 = vmatprep.subr.mxu0 0.0
    %616 = vmatpush1.xpose.msra.mxu0 0.0
    %617 = vmatprep.subr.mxu0 0.0
    %618 = vmatpush1.xpose.msra.mxu0 0.0
    %619 = vmatprep.mubr.f32.mxu0 0.0
    %620 = vmatmul.mubr.f32.gmra.mrb[0].mxu0 %v551
    %v621 = vpop.f32.mrb[0].mxu0
    %v622 = vadd.f32 0.0, %v621
    %v623 = vpop.f32.mrb[0].mxu0
    %624 = vdwg.mxu0
    %626 = vrot.lane.b32.xlu0 %v154, 120
    %v627 = vpop.permute.xlu0 %626
    %v628 = vsel %vm165, %v154, 0
    %v630 = vsel %vm165, %v627, 0
    %632 = vmatprep.subr.mxu0 0.0
    %633 = vmatpush1.xpose.msra.mxu0 %v630
    %634 = vmatprep.subr.mxu0 0.0
    %635 = vmatpush1.xpose.msra.mxu0 0.0
    %636 = vmatprep.subr.mxu0 0.0
    %637 = vmatpush1.xpose.msra.mxu0 0.0
    %638 = vmatprep.subr.mxu0 0.0
    %639 = vmatpush1.xpose.msra.mxu0 0.0
    %640 = vmatprep.subr.mxu0 0.0
    %641 = vmatpush1.xpose.msra.mxu0 0.0
    %642 = vmatprep.subr.mxu0 0.0
    %643 = vmatpush1.xpose.msra.mxu0 0.0
    %644 = vmatprep.subr.mxu0 0.0
    %645 = vmatpush1.xpose.msra.mxu0 0.0
    %646 = vmatprep.subr.mxu0 0.0
    %647 = vmatpush1.xpose.msra.mxu0 0.0
    %648 = vmatprep.subr.mxu0 0.0
    %649 = vmatpush1.xpose.msra.mxu0 0.0
    %650 = vmatprep.subr.mxu0 0.0
    %651 = vmatpush1.xpose.msra.mxu0 0.0
    %652 = vmatprep.subr.mxu0 0.0
    %653 = vmatpush1.xpose.msra.mxu0 0.0
    %654 = vmatprep.subr.mxu0 0.0
    %655 = vmatpush1.xpose.msra.mxu0 0.0
    %656 = vmatprep.subr.mxu0 0.0
    %657 = vmatpush1.xpose.msra.mxu0 0.0
    %658 = vmatprep.subr.mxu0 0.0
    %659 = vmatpush1.xpose.msra.mxu0 0.0
    %660 = vmatprep.subr.mxu0 0.0
    %661 = vmatpush1.xpose.msra.mxu0 0.0
    %662 = vmatprep.subr.mxu0 0.0
    %663 = vmatpush1.xpose.msra.mxu0 0.0
    %664 = vmatprep.subr.mxu0 0.0
    %665 = vmatpush1.xpose.msra.mxu0 0.0
    %666 = vmatprep.subr.mxu0 0.0
    %667 = vmatpush1.xpose.msra.mxu0 0.0
    %668 = vmatprep.subr.mxu0 0.0
    %669 = vmatpush1.xpose.msra.mxu0 0.0
    %670 = vmatprep.subr.mxu0 0.0
    %671 = vmatpush1.xpose.msra.mxu0 0.0
    %672 = vmatprep.subr.mxu0 0.0
    %673 = vmatpush1.xpose.msra.mxu0 0.0
    %674 = vmatprep.subr.mxu0 0.0
    %675 = vmatpush1.xpose.msra.mxu0 0.0
    %676 = vmatprep.subr.mxu0 0.0
    %677 = vmatpush1.xpose.msra.mxu0 0.0
    %678 = vmatprep.subr.mxu0 0.0
    %679 = vmatpush1.xpose.msra.mxu0 0.0
    %680 = vmatprep.subr.mxu0 0.0
    %681 = vmatpush1.xpose.msra.mxu0 0.0
    %682 = vmatprep.subr.mxu0 0.0
    %683 = vmatpush1.xpose.msra.mxu0 0.0
    %684 = vmatprep.subr.mxu0 0.0
    %685 = vmatpush1.xpose.msra.mxu0 0.0
    %686 = vmatprep.subr.mxu0 0.0
    %687 = vmatpush1.xpose.msra.mxu0 0.0
    %688 = vmatprep.subr.mxu0 0.0
    %689 = vmatpush1.xpose.msra.mxu0 0.0
    %690 = vmatprep.subr.mxu0 0.0
    %691 = vmatpush1.xpose.msra.mxu0 0.0
    %692 = vmatprep.subr.mxu0 0.0
    %693 = vmatpush1.xpose.msra.mxu0 0.0
    %694 = vmatprep.subr.mxu0 0.0
    %695 = vmatpush1.xpose.msra.mxu0 0.0
    %696 = vmatprep.mubr.f32.mxu0 0.0
    %697 = vmatmul.mubr.f32.gmra.mrb[0].mxu0 %v628
    %v698 = vpop.f32.mrb[0].mxu0
    %v699 = vadd.f32 0.0, %v698
    %v700 = vpop.f32.mrb[0].mxu0
    %701 = vdwg.mxu0
    %703 = vrot.lane.b32.xlu0 %v159, 120
    %v704 = vpop.permute.xlu0 %703
    %v705 = vsel %vm165, %v159, 0
    %v707 = vsel %vm165, %v704, 0
    %709 = vmatprep.subr.mxu0 0.0
    %710 = vmatpush1.xpose.msra.mxu0 %v707
    %711 = vmatprep.subr.mxu0 0.0
    %712 = vmatpush1.xpose.msra.mxu0 0.0
    %713 = vmatprep.subr.mxu0 0.0
    %714 = vmatpush1.xpose.msra.mxu0 0.0
    %715 = vmatprep.subr.mxu0 0.0
    %716 = vmatpush1.xpose.msra.mxu0 0.0
    %717 = vmatprep.subr.mxu0 0.0
    %718 = vmatpush1.xpose.msra.mxu0 0.0
    %719 = vmatprep.subr.mxu0 0.0
    %720 = vmatpush1.xpose.msra.mxu0 0.0
    %721 = vmatprep.subr.mxu0 0.0
    %722 = vmatpush1.xpose.msra.mxu0 0.0
    %723 = vmatprep.subr.mxu0 0.0
    %724 = vmatpush1.xpose.msra.mxu0 0.0
    %725 = vmatprep.subr.mxu0 0.0
    %726 = vmatpush1.xpose.msra.mxu0 0.0
    %727 = vmatprep.subr.mxu0 0.0
    %728 = vmatpush1.xpose.msra.mxu0 0.0
    %729 = vmatprep.subr.mxu0 0.0
    %730 = vmatpush1.xpose.msra.mxu0 0.0
    %731 = vmatprep.subr.mxu0 0.0
    %732 = vmatpush1.xpose.msra.mxu0 0.0
    %733 = vmatprep.subr.mxu0 0.0
    %734 = vmatpush1.xpose.msra.mxu0 0.0
    %735 = vmatprep.subr.mxu0 0.0
    %736 = vmatpush1.xpose.msra.mxu0 0.0
    %737 = vmatprep.subr.mxu0 0.0
    %738 = vmatpush1.xpose.msra.mxu0 0.0
    %739 = vmatprep.subr.mxu0 0.0
    %740 = vmatpush1.xpose.msra.mxu0 0.0
    %741 = vmatprep.subr.mxu0 0.0
    %742 = vmatpush1.xpose.msra.mxu0 0.0
    %743 = vmatprep.subr.mxu0 0.0
    %744 = vmatpush1.xpose.msra.mxu0 0.0
    %745 = vmatprep.subr.mxu0 0.0
    %746 = vmatpush1.xpose.msra.mxu0 0.0
    %747 = vmatprep.subr.mxu0 0.0
    %748 = vmatpush1.xpose.msra.mxu0 0.0
    %749 = vmatprep.subr.mxu0 0.0
    %750 = vmatpush1.xpose.msra.mxu0 0.0
    %751 = vmatprep.subr.mxu0 0.0
    %752 = vmatpush1.xpose.msra.mxu0 0.0
    %753 = vmatprep.subr.mxu0 0.0
    %754 = vmatpush1.xpose.msra.mxu0 0.0
    %755 = vmatprep.subr.mxu0 0.0
    %756 = vmatpush1.xpose.msra.mxu0 0.0
    %757 = vmatprep.subr.mxu0 0.0
    %758 = vmatpush1.xpose.msra.mxu0 0.0
    %759 = vmatprep.subr.mxu0 0.0
    %760 = vmatpush1.xpose.msra.mxu0 0.0
    %761 = vmatprep.subr.mxu0 0.0
    %762 = vmatpush1.xpose.msra.mxu0 0.0
    %763 = vmatprep.subr.mxu0 0.0
    %764 = vmatpush1.xpose.msra.mxu0 0.0
    %765 = vmatprep.subr.mxu0 0.0
    %766 = vmatpush1.xpose.msra.mxu0 0.0
    %767 = vmatprep.subr.mxu0 0.0
    %768 = vmatpush1.xpose.msra.mxu0 0.0
    %769 = vmatprep.subr.mxu0 0.0
    %770 = vmatpush1.xpose.msra.mxu0 0.0
    %771 = vmatprep.subr.mxu0 0.0
    %772 = vmatpush1.xpose.msra.mxu0 0.0
    %773 = vmatprep.mubr.f32.mxu0 0.0
    %774 = vmatmul.mubr.f32.gmra.mrb[0].mxu0 %v705
    %v775 = vpop.f32.mrb[0].mxu0
    %v776 = vadd.f32 0.0, %v775
    %v777 = vpop.f32.mrb[0].mxu0
    %778 = vdwg.mxu0
    %v779 = vmul.f32 %v237, 0.35355338
    %v780 = vmul.f32 %v314, 0.35355338
    %v781 = vmul.f32 %v391, 0.35355338
    %v782 = vmul.f32 %v468, 0.35355338
    %v783 = vmul.f32 %v545, 0.35355338
    %v784 = vmul.f32 %v622, 0.35355338
    %v785 = vmul.f32 %v699, 0.35355338
    %v786 = vmul.f32 %v776, 0.35355338
    %v787 = vsel %vm165, %v779, -inf
    %788 = vmax.xlane.f32.xlu0 %v787
    %v789 = vpop.xlane.xlu0 %788
    %v790 = vsel %vm165, %v780, -inf
    %791 = vmax.xlane.f32.xlu0 %v790
    %v792 = vpop.xlane.xlu0 %791
    %v793 = vsel %vm165, %v781, -inf
    %794 = vmax.xlane.f32.xlu0 %v793
    %v795 = vpop.xlane.xlu0 %794
    %v796 = vsel %vm165, %v782, -inf
    %797 = vmax.xlane.f32.xlu0 %v796
    %v798 = vpop.xlane.xlu0 %797
    %v799 = vsel %vm165, %v783, -inf
    %800 = vmax.xlane.f32.xlu0 %v799
    %v801 = vpop.xlane.xlu0 %800
    %v802 = vsel %vm165, %v784, -inf
    %803 = vmax.xlane.f32.xlu0 %v802
    %v804 = vpop.xlane.xlu0 %803
    %v805 = vsel %vm165, %v785, -inf
    %806 = vmax.xlane.f32.xlu0 %v805
    %v807 = vpop.xlane.xlu0 %806
    %v808 = vsel %vm165, %v786, -inf
    %809 = vmax.xlane.f32.xlu0 %v808
    %v810 = vpop.xlane.xlu0 %809
    %v811 = vsub.f32 %v779, %v789
    %v812 = vsub.f32 %v780, %v792
    %v813 = vsub.f32 %v781, %v795
    %v814 = vsub.f32 %v782, %v798
    %v815 = vsub.f32 %v783, %v801
    %v816 = vsub.f32 %v784, %v804
    %v817 = vsub.f32 %v785, %v807
    %v818 = vsub.f32 %v786, %v810
    %v819 = vmul.f32 %v811, 1.442695
    %v820 = vpow.pop %v819
    %v821 = vmul.f32 %v812, 1.442695
    %v822 = vpow.pop %v821
    %v823 = vmul.f32 %v813, 1.442695
    %v824 = vpow.pop %v823
    %v825 = vmul.f32 %v814, 1.442695
    %v826 = vpow.pop %v825
    %v827 = vmul.f32 %v815, 1.442695
    %v828 = vpow.pop %v827
    %v829 = vmul.f32 %v816, 1.442695
    %v830 = vpow.pop %v829
    %v831 = vmul.f32 %v817, 1.442695
    %v832 = vpow.pop %v831
    %v833 = vmul.f32 %v818, 1.442695
    %v834 = vpow.pop %v833
    %v835 = vsel %vm165, %v820, 0.0
    %836 = vadd.xlane.f32.xlu0 %v835
    %v837 = vpop.xlane.xlu0 %836
    %v838 = vsel %vm165, %v822, 0.0
    %839 = vadd.xlane.f32.xlu0 %v838
    %v840 = vpop.xlane.xlu0 %839
    %v841 = vsel %vm165, %v824, 0.0
    %842 = vadd.xlane.f32.xlu0 %v841
    %v843 = vpop.xlane.xlu0 %842
    %v844 = vsel %vm165, %v826, 0.0
    %845 = vadd.xlane.f32.xlu0 %v844
    %v846 = vpop.xlane.xlu0 %845
    %v847 = vsel %vm165, %v828, 0.0
    %848 = vadd.xlane.f32.xlu0 %v847
    %v849 = vpop.xlane.xlu0 %848
    %v850 = vsel %vm165, %v830, 0.0
    %851 = vadd.xlane.f32.xlu0 %v850
    %v852 = vpop.xlane.xlu0 %851
    %v853 = vsel %vm165, %v832, 0.0
    %854 = vadd.xlane.f32.xlu0 %v853
    %v855 = vpop.xlane.xlu0 %854
    %v856 = vsel %vm165, %v834, 0.0
    %857 = vadd.xlane.f32.xlu0 %v856
    %v858 = vpop.xlane.xlu0 %857
    %v859 = vrcp.pop %v837
    %v860 = vmul.f32 %v820, %v859
    %v861 = vrcp.pop %v840
    %v862 = vmul.f32 %v822, %v861
    %v863 = vrcp.pop %v843
    %v864 = vmul.f32 %v824, %v863
    %v865 = vrcp.pop %v846
    %v866 = vmul.f32 %v826, %v865
    %v867 = vrcp.pop %v849
    %v868 = vmul.f32 %v828, %v867
    %v869 = vrcp.pop %v852
    %v870 = vmul.f32 %v830, %v869
    %v871 = vrcp.pop %v855
    %v872 = vmul.f32 %v832, %v871
    %v873 = vrcp.pop %v858
    %v874 = vmul.f32 %v834, %v873
    %875 = vrot.lane.b32.xlu0 %v124, 112
    %v876 = vpop.permute.xlu0 %875
    %v879 = vsel %vm165, %v860, 0
    %881 = vmatprep.subr.mxu0 0.0
    %882 = vmatpush1.msra.mxu0 %v876
    %883 = vmatprep.subr.mxu0 0.0
    %884 = vmatpush1.msra.mxu0 0.0
    %885 = vmatprep.subr.mxu0 0.0
    %886 = vmatpush1.msra.mxu0 0.0
    %887 = vmatprep.subr.mxu0 0.0
    %888 = vmatpush1.msra.mxu0 0.0
    %889 = vmatprep.subr.mxu0 0.0
    %890 = vmatpush1.msra.mxu0 0.0
    %891 = vmatprep.subr.mxu0 0.0
    %892 = vmatpush1.msra.mxu0 0.0
    %893 = vmatprep.subr.mxu0 0.0
    %894 = vmatpush1.msra.mxu0 0.0
    %895 = vmatprep.subr.mxu0 0.0
    %896 = vmatpush1.msra.mxu0 0.0
    %897 = vmatprep.subr.mxu0 0.0
    %898 = vmatpush1.msra.mxu0 0.0
    %899 = vmatprep.subr.mxu0 0.0
    %900 = vmatpush1.msra.mxu0 0.0
    %901 = vmatprep.subr.mxu0 0.0
    %902 = vmatpush1.msra.mxu0 0.0
    %903 = vmatprep.subr.mxu0 0.0
    %904 = vmatpush1.msra.mxu0 0.0
    %905 = vmatprep.subr.mxu0 0.0
    %906 = vmatpush1.msra.mxu0 0.0
    %907 = vmatprep.subr.mxu0 0.0
    %908 = vmatpush1.msra.mxu0 0.0
    %909 = vmatprep.subr.mxu0 0.0
    %910 = vmatpush1.msra.mxu0 0.0
    %911 = vmatprep.subr.mxu0 0.0
    %912 = vmatpush1.msra.mxu0 0.0
    %913 = vmatprep.subr.mxu0 0.0
    %914 = vmatpush1.msra.mxu0 0.0
    %915 = vmatprep.subr.mxu0 0.0
    %916 = vmatpush1.msra.mxu0 0.0
    %917 = vmatprep.subr.mxu0 0.0
    %918 = vmatpush1.msra.mxu0 0.0
    %919 = vmatprep.subr.mxu0 0.0
    %920 = vmatpush1.msra.mxu0 0.0
    %921 = vmatprep.subr.mxu0 0.0
    %922 = vmatpush1.msra.mxu0 0.0
    %923 = vmatprep.subr.mxu0 0.0
    %924 = vmatpush1.msra.mxu0 0.0
    %925 = vmatprep.subr.mxu0 0.0
    %926 = vmatpush1.msra.mxu0 0.0
    %927 = vmatprep.subr.mxu0 0.0
    %928 = vmatpush1.msra.mxu0 0.0
    %929 = vmatprep.subr.mxu0 0.0
    %930 = vmatpush1.msra.mxu0 0.0
    %931 = vmatprep.subr.mxu0 0.0
    %932 = vmatpush1.msra.mxu0 0.0
    %933 = vmatprep.subr.mxu0 0.0
    %934 = vmatpush1.msra.mxu0 0.0
    %935 = vmatprep.subr.mxu0 0.0
    %936 = vmatpush1.msra.mxu0 0.0
    %937 = vmatprep.subr.mxu0 0.0
    %938 = vmatpush1.msra.mxu0 0.0
    %939 = vmatprep.subr.mxu0 0.0
    %940 = vmatpush1.msra.mxu0 0.0
    %941 = vmatprep.subr.mxu0 0.0
    %942 = vmatpush1.msra.mxu0 0.0
    %943 = vmatprep.subr.mxu0 0.0
    %944 = vmatpush1.msra.mxu0 0.0
    %945 = vmatprep.mubr.f32.mxu0 0.0
    %946 = vmatmul.mubr.f32.gmra.mrb[0].mxu0 %v879
    %v947 = vpop.f32.mrb[0].mxu0
    %v948 = vadd.f32 0.0, %v947
    %v949 = vpop.f32.mrb[0].mxu0
    %950 = vdwg.mxu0
    %951 = vrot.lane.b32.xlu0 %v129, 112
    %v952 = vpop.permute.xlu0 %951
    %v955 = vsel %vm165, %v862, 0
    %957 = vmatprep.subr.mxu0 0.0
    %958 = vmatpush1.msra.mxu0 %v952
    %959 = vmatprep.subr.mxu0 0.0
    %960 = vmatpush1.msra.mxu0 0.0
    %961 = vmatprep.subr.mxu0 0.0
    %962 = vmatpush1.msra.mxu0 0.0
    %963 = vmatprep.subr.mxu0 0.0
    %964 = vmatpush1.msra.mxu0 0.0
    %965 = vmatprep.subr.mxu0 0.0
    %966 = vmatpush1.msra.mxu0 0.0
    %967 = vmatprep.subr.mxu0 0.0
    %968 = vmatpush1.msra.mxu0 0.0
    %969 = vmatprep.subr.mxu0 0.0
    %970 = vmatpush1.msra.mxu0 0.0
    %971 = vmatprep.subr.mxu0 0.0
    %972 = vmatpush1.msra.mxu0 0.0
    %973 = vmatprep.subr.mxu0 0.0
    %974 = vmatpush1.msra.mxu0 0.0
    %975 = vmatprep.subr.mxu0 0.0
    %976 = vmatpush1.msra.mxu0 0.0
    %977 = vmatprep.subr.mxu0 0.0
    %978 = vmatpush1.msra.mxu0 0.0
    %979 = vmatprep.subr.mxu0 0.0
    %980 = vmatpush1.msra.mxu0 0.0
    %981 = vmatprep.subr.mxu0 0.0
    %982 = vmatpush1.msra.mxu0 0.0
    %983 = vmatprep.subr.mxu0 0.0
    %984 = vmatpush1.msra.mxu0 0.0
    %985 = vmatprep.subr.mxu0 0.0
    %986 = vmatpush1.msra.mxu0 0.0
    %987 = vmatprep.subr.mxu0 0.0
    %988 = vmatpush1.msra.mxu0 0.0
    %989 = vmatprep.subr.mxu0 0.0
    %990 = vmatpush1.msra.mxu0 0.0
    %991 = vmatprep.subr.mxu0 0.0
    %992 = vmatpush1.msra.mxu0 0.0
    %993 = vmatprep.subr.mxu0 0.0
    %994 = vmatpush1.msra.mxu0 0.0
    %995 = vmatprep.subr.mxu0 0.0
    %996 = vmatpush1.msra.mxu0 0.0
    %997 = vmatprep.subr.mxu0 0.0
    %998 = vmatpush1.msra.mxu0 0.0
    %999 = vmatprep.subr.mxu0 0.0
    %1000 = vmatpush1.msra.mxu0 0.0
    %1001 = vmatprep.subr.mxu0 0.0
    %1002 = vmatpush1.msra.mxu0 0.0
    %1003 = vmatprep.subr.mxu0 0.0
    %1004 = vmatpush1.msra.mxu0 0.0
    %1005 = vmatprep.subr.mxu0 0.0
    %1006 = vmatpush1.msra.mxu0 0.0
    %1007 = vmatprep.subr.mxu0 0.0
    %1008 = vmatpush1.msra.mxu0 0.0
    %1009 = vmatprep.subr.mxu0 0.0
    %1010 = vmatpush1.msra.mxu0 0.0
    %1011 = vmatprep.subr.mxu0 0.0
    %1012 = vmatpush1.msra.mxu0 0.0
    %1013 = vmatprep.subr.mxu0 0.0
    %1014 = vmatpush1.msra.mxu0 0.0
    %1015 = vmatprep.subr.mxu0 0.0
    %1016 = vmatpush1.msra.mxu0 0.0
    %1017 = vmatprep.subr.mxu0 0.0
    %1018 = vmatpush1.msra.mxu0 0.0
    %1019 = vmatprep.subr.mxu0 0.0
    %1020 = vmatpush1.msra.mxu0 0.0
    %1021 = vmatprep.mubr.f32.mxu0 0.0
    %1022 = vmatmul.mubr.f32.gmra.mrb[0].mxu0 %v955
    %v1023 = vpop.f32.mrb[0].mxu0
    %v1024 = vadd.f32 0.0, %v1023
    %v1025 = vpop.f32.mrb[0].mxu0
    %1026 = vdwg.mxu0
    %1027 = vrot.lane.b32.xlu0 %v134, 112
    %v1028 = vpop.permute.xlu0 %1027
    %v1031 = vsel %vm165, %v864, 0
    %1033 = vmatprep.subr.mxu0 0.0
    %1034 = vmatpush1.msra.mxu0 %v1028
    %1035 = vmatprep.subr.mxu0 0.0
    %1036 = vmatpush1.msra.mxu0 0.0
    %1037 = vmatprep.subr.mxu0 0.0
    %1038 = vmatpush1.msra.mxu0 0.0
    %1039 = vmatprep.subr.mxu0 0.0
    %1040 = vmatpush1.msra.mxu0 0.0
    %1041 = vmatprep.subr.mxu0 0.0
    %1042 = vmatpush1.msra.mxu0 0.0
    %1043 = vmatprep.subr.mxu0 0.0
    %1044 = vmatpush1.msra.mxu0 0.0
    %1045 = vmatprep.subr.mxu0 0.0
    %1046 = vmatpush1.msra.mxu0 0.0
    %1047 = vmatprep.subr.mxu0 0.0
    %1048 = vmatpush1.msra.mxu0 0.0
    %1049 = vmatprep.subr.mxu0 0.0
    %1050 = vmatpush1.msra.mxu0 0.0
    %1051 = vmatprep.subr.mxu0 0.0
    %1052 = vmatpush1.msra.mxu0 0.0
    %1053 = vmatprep.subr.mxu0 0.0
    %1054 = vmatpush1.msra.mxu0 0.0
    %1055 = vmatprep.subr.mxu0 0.0
    %1056 = vmatpush1.msra.mxu0 0.0
    %1057 = vmatprep.subr.mxu0 0.0
    %1058 = vmatpush1.msra.mxu0 0.0
    %1059 = vmatprep.subr.mxu0 0.0
    %1060 = vmatpush1.msra.mxu0 0.0
    %1061 = vmatprep.subr.mxu0 0.0
    %1062 = vmatpush1.msra.mxu0 0.0
    %1063 = vmatprep.subr.mxu0 0.0
    %1064 = vmatpush1.msra.mxu0 0.0
    %1065 = vmatprep.subr.mxu0 0.0
    %1066 = vmatpush1.msra.mxu0 0.0
    %1067 = vmatprep.subr.mxu0 0.0
    %1068 = vmatpush1.msra.mxu0 0.0
    %1069 = vmatprep.subr.mxu0 0.0
    %1070 = vmatpush1.msra.mxu0 0.0
    %1071 = vmatprep.subr.mxu0 0.0
    %1072 = vmatpush1.msra.mxu0 0.0
    %1073 = vmatprep.subr.mxu0 0.0
    %1074 = vmatpush1.msra.mxu0 0.0
    %1075 = vmatprep.subr.mxu0 0.0
    %1076 = vmatpush1.msra.mxu0 0.0
    %1077 = vmatprep.subr.mxu0 0.0
    %1078 = vmatpush1.msra.mxu0 0.0
    %1079 = vmatprep.subr.mxu0 0.0
    %1080 = vmatpush1.msra.mxu0 0.0
    %1081 = vmatprep.subr.mxu0 0.0
    %1082 = vmatpush1.msra.mxu0 0.0
    %1083 = vmatprep.subr.mxu0 0.0
    %1084 = vmatpush1.msra.mxu0 0.0
    %1085 = vmatprep.subr.mxu0 0.0
    %1086 = vmatpush1.msra.mxu0 0.0
    %1087 = vmatprep.subr.mxu0 0.0
    %1088 = vmatpush1.msra.mxu0 0.0
    %1089 = vmatprep.subr.mxu0 0.0
    %1090 = vmatpush1.msra.mxu0 0.0
    %1091 = vmatprep.subr.mxu0 0.0
    %1092 = vmatpush1.msra.mxu0 0.0
    %1093 = vmatprep.subr.mxu0 0.0
    %1094 = vmatpush1.msra.mxu0 0.0
    %1095 = vmatprep.subr.mxu0 0.0
    %1096 = vmatpush1.msra.mxu0 0.0
    %1097 = vmatprep.mubr.f32.mxu0 0.0
    %1098 = vmatmul.mubr.f32.gmra.mrb[0].mxu0 %v1031
    %v1099 = vpop.f32.mrb[0].mxu0
    %v1100 = vadd.f32 0.0, %v1099
    %v1101 = vpop.f32.mrb[0].mxu0
    %1102 = vdwg.mxu0
    %1103 = vrot.lane.b32.xlu0 %v139, 112
    %v1104 = vpop.permute.xlu0 %1103
    %v1107 = vsel %vm165, %v866, 0
    %1109 = vmatprep.subr.mxu0 0.0
    %1110 = vmatpush1.msra.mxu0 %v1104
    %1111 = vmatprep.subr.mxu0 0.0
    %1112 = vmatpush1.msra.mxu0 0.0
    %1113 = vmatprep.subr.mxu0 0.0
    %1114 = vmatpush1.msra.mxu0 0.0
    %1115 = vmatprep.subr.mxu0 0.0
    %1116 = vmatpush1.msra.mxu0 0.0
    %1117 = vmatprep.subr.mxu0 0.0
    %1118 = vmatpush1.msra.mxu0 0.0
    %1119 = vmatprep.subr.mxu0 0.0
    %1120 = vmatpush1.msra.mxu0 0.0
    %1121 = vmatprep.subr.mxu0 0.0
    %1122 = vmatpush1.msra.mxu0 0.0
    %1123 = vmatprep.subr.mxu0 0.0
    %1124 = vmatpush1.msra.mxu0 0.0
    %1125 = vmatprep.subr.mxu0 0.0
    %1126 = vmatpush1.msra.mxu0 0.0
    %1127 = vmatprep.subr.mxu0 0.0
    %1128 = vmatpush1.msra.mxu0 0.0
    %1129 = vmatprep.subr.mxu0 0.0
    %1130 = vmatpush1.msra.mxu0 0.0
    %1131 = vmatprep.subr.mxu0 0.0
    %1132 = vmatpush1.msra.mxu0 0.0
    %1133 = vmatprep.subr.mxu0 0.0
    %1134 = vmatpush1.msra.mxu0 0.0
    %1135 = vmatprep.subr.mxu0 0.0
    %1136 = vmatpush1.msra.mxu0 0.0
    %1137 = vmatprep.subr.mxu0 0.0
    %1138 = vmatpush1.msra.mxu0 0.0
    %1139 = vmatprep.subr.mxu0 0.0
    %1140 = vmatpush1.msra.mxu0 0.0
    %1141 = vmatprep.subr.mxu0 0.0
    %1142 = vmatpush1.msra.mxu0 0.0
    %1143 = vmatprep.subr.mxu0 0.0
    %1144 = vmatpush1.msra.mxu0 0.0
    %1145 = vmatprep.subr.mxu0 0.0
    %1146 = vmatpush1.msra.mxu0 0.0
    %1147 = vmatprep.subr.mxu0 0.0
    %1148 = vmatpush1.msra.mxu0 0.0
    %1149 = vmatprep.subr.mxu0 0.0
    %1150 = vmatpush1.msra.mxu0 0.0
    %1151 = vmatprep.subr.mxu0 0.0
    %1152 = vmatpush1.msra.mxu0 0.0
    %1153 = vmatprep.subr.mxu0 0.0
    %1154 = vmatpush1.msra.mxu0 0.0
    %1155 = vmatprep.subr.mxu0 0.0
    %1156 = vmatpush1.msra.mxu0 0.0
    %1157 = vmatprep.subr.mxu0 0.0
    %1158 = vmatpush1.msra.mxu0 0.0
    %1159 = vmatprep.subr.mxu0 0.0
    %1160 = vmatpush1.msra.mxu0 0.0
    %1161 = vmatprep.subr.mxu0 0.0
    %1162 = vmatpush1.msra.mxu0 0.0
    %1163 = vmatprep.subr.mxu0 0.0
    %1164 = vmatpush1.msra.mxu0 0.0
    %1165 = vmatprep.subr.mxu0 0.0
    %1166 = vmatpush1.msra.mxu0 0.0
    %1167 = vmatprep.subr.mxu0 0.0
    %1168 = vmatpush1.msra.mxu0 0.0
    %1169 = vmatprep.subr.mxu0 0.0
    %1170 = vmatpush1.msra.mxu0 0.0
    %1171 = vmatprep.subr.mxu0 0.0
    %1172 = vmatpush1.msra.mxu0 0.0
    %1173 = vmatprep.mubr.f32.mxu0 0.0
    %1174 = vmatmul.mubr.f32.gmra.mrb[0].mxu0 %v1107
    %v1175 = vpop.f32.mrb[0].mxu0
    %v1176 = vadd.f32 0.0, %v1175
    %v1177 = vpop.f32.mrb[0].mxu0
    %1178 = vdwg.mxu0
    %1179 = vrot.lane.b32.xlu0 %v144, 112
    %v1180 = vpop.permute.xlu0 %1179
    %v1183 = vsel %vm165, %v868, 0
    %1185 = vmatprep.subr.mxu0 0.0
    %1186 = vmatpush1.msra.mxu0 %v1180
    %1187 = vmatprep.subr.mxu0 0.0
    %1188 = vmatpush1.msra.mxu0 0.0
    %1189 = vmatprep.subr.mxu0 0.0
    %1190 = vmatpush1.msra.mxu0 0.0
    %1191 = vmatprep.subr.mxu0 0.0
    %1192 = vmatpush1.msra.mxu0 0.0
    %1193 = vmatprep.subr.mxu0 0.0
    %1194 = vmatpush1.msra.mxu0 0.0
    %1195 = vmatprep.subr.mxu0 0.0
    %1196 = vmatpush1.msra.mxu0 0.0
    %1197 = vmatprep.subr.mxu0 0.0
    %1198 = vmatpush1.msra.mxu0 0.0
    %1199 = vmatprep.subr.mxu0 0.0
    %1200 = vmatpush1.msra.mxu0 0.0
    %1201 = vmatprep.subr.mxu0 0.0
    %1202 = vmatpush1.msra.mxu0 0.0
    %1203 = vmatprep.subr.mxu0 0.0
    %1204 = vmatpush1.msra.mxu0 0.0
    %1205 = vmatprep.subr.mxu0 0.0
    %1206 = vmatpush1.msra.mxu0 0.0
    %1207 = vmatprep.subr.mxu0 0.0
    %1208 = vmatpush1.msra.mxu0 0.0
    %1209 = vmatprep.subr.mxu0 0.0
    %1210 = vmatpush1.msra.mxu0 0.0
    %1211 = vmatprep.subr.mxu0 0.0
    %1212 = vmatpush1.msra.mxu0 0.0
    %1213 = vmatprep.subr.mxu0 0.0
    %1214 = vmatpush1.msra.mxu0 0.0
    %1215 = vmatprep.subr.mxu0 0.0
    %1216 = vmatpush1.msra.mxu0 0.0
    %1217 = vmatprep.subr.mxu0 0.0
    %1218 = vmatpush1.msra.mxu0 0.0
    %1219 = vmatprep.subr.mxu0 0.0
    %1220 = vmatpush1.msra.mxu0 0.0
    %1221 = vmatprep.subr.mxu0 0.0
    %1222 = vmatpush1.msra.mxu0 0.0
    %1223 = vmatprep.subr.mxu0 0.0
    %1224 = vmatpush1.msra.mxu0 0.0
    %1225 = vmatprep.subr.mxu0 0.0
    %1226 = vmatpush1.msra.mxu0 0.0
    %1227 = vmatprep.subr.mxu0 0.0
    %1228 = vmatpush1.msra.mxu0 0.0
    %1229 = vmatprep.subr.mxu0 0.0
    %1230 = vmatpush1.msra.mxu0 0.0
    %1231 = vmatprep.subr.mxu0 0.0
    %1232 = vmatpush1.msra.mxu0 0.0
    %1233 = vmatprep.subr.mxu0 0.0
    %1234 = vmatpush1.msra.mxu0 0.0
    %1235 = vmatprep.subr.mxu0 0.0
    %1236 = vmatpush1.msra.mxu0 0.0
    %1237 = vmatprep.subr.mxu0 0.0
    %1238 = vmatpush1.msra.mxu0 0.0
    %1239 = vmatprep.subr.mxu0 0.0
    %1240 = vmatpush1.msra.mxu0 0.0
    %1241 = vmatprep.subr.mxu0 0.0
    %1242 = vmatpush1.msra.mxu0 0.0
    %1243 = vmatprep.subr.mxu0 0.0
    %1244 = vmatpush1.msra.mxu0 0.0
    %1245 = vmatprep.subr.mxu0 0.0
    %1246 = vmatpush1.msra.mxu0 0.0
    %1247 = vmatprep.subr.mxu0 0.0
    %1248 = vmatpush1.msra.mxu0 0.0
    %1249 = vmatprep.mubr.f32.mxu0 0.0
    %1250 = vmatmul.mubr.f32.gmra.mrb[0].mxu0 %v1183
    %v1251 = vpop.f32.mrb[0].mxu0
    %v1252 = vadd.f32 0.0, %v1251
    %v1253 = vpop.f32.mrb[0].mxu0
    %1254 = vdwg.mxu0
    %1255 = vrot.lane.b32.xlu0 %v149, 112
    %v1256 = vpop.permute.xlu0 %1255
    %v1259 = vsel %vm165, %v870, 0
    %1261 = vmatprep.subr.mxu0 0.0
    %1262 = vmatpush1.msra.mxu0 %v1256
    %1263 = vmatprep.subr.mxu0 0.0
    %1264 = vmatpush1.msra.mxu0 0.0
    %1265 = vmatprep.subr.mxu0 0.0
    %1266 = vmatpush1.msra.mxu0 0.0
    %1267 = vmatprep.subr.mxu0 0.0
    %1268 = vmatpush1.msra.mxu0 0.0
    %1269 = vmatprep.subr.mxu0 0.0
    %1270 = vmatpush1.msra.mxu0 0.0
    %1271 = vmatprep.subr.mxu0 0.0
    %1272 = vmatpush1.msra.mxu0 0.0
    %1273 = vmatprep.subr.mxu0 0.0
    %1274 = vmatpush1.msra.mxu0 0.0
    %1275 = vmatprep.subr.mxu0 0.0
    %1276 = vmatpush1.msra.mxu0 0.0
    %1277 = vmatprep.subr.mxu0 0.0
    %1278 = vmatpush1.msra.mxu0 0.0
    %1279 = vmatprep.subr.mxu0 0.0
    %1280 = vmatpush1.msra.mxu0 0.0
    %1281 = vmatprep.subr.mxu0 0.0
    %1282 = vmatpush1.msra.mxu0 0.0
    %1283 = vmatprep.subr.mxu0 0.0
    %1284 = vmatpush1.msra.mxu0 0.0
    %1285 = vmatprep.subr.mxu0 0.0
    %1286 = vmatpush1.msra.mxu0 0.0
    %1287 = vmatprep.subr.mxu0 0.0
    %1288 = vmatpush1.msra.mxu0 0.0
    %1289 = vmatprep.subr.mxu0 0.0
    %1290 = vmatpush1.msra.mxu0 0.0
    %1291 = vmatprep.subr.mxu0 0.0
    %1292 = vmatpush1.msra.mxu0 0.0
    %1293 = vmatprep.subr.mxu0 0.0
    %1294 = vmatpush1.msra.mxu0 0.0
    %1295 = vmatprep.subr.mxu0 0.0
    %1296 = vmatpush1.msra.mxu0 0.0
    %1297 = vmatprep.subr.mxu0 0.0
    %1298 = vmatpush1.msra.mxu0 0.0
    %1299 = vmatprep.subr.mxu0 0.0
    %1300 = vmatpush1.msra.mxu0 0.0
    %1301 = vmatprep.subr.mxu0 0.0
    %1302 = vmatpush1.msra.mxu0 0.0
    %1303 = vmatprep.subr.mxu0 0.0
    %1304 = vmatpush1.msra.mxu0 0.0
    %1305 = vmatprep.subr.mxu0 0.0
    %1306 = vmatpush1.msra.mxu0 0.0
    %1307 = vmatprep.subr.mxu0 0.0
    %1308 = vmatpush1.msra.mxu0 0.0
    %1309 = vmatprep.subr.mxu0 0.0
    %1310 = vmatpush1.msra.mxu0 0.0
    %1311 = vmatprep.subr.mxu0 0.0
    %1312 = vmatpush1.msra.mxu0 0.0
    %1313 = vmatprep.subr.mxu0 0.0
    %1314 = vmatpush1.msra.mxu0 0.0
    %1315 = vmatprep.subr.mxu0 0.0
    %1316 = vmatpush1.msra.mxu0 0.0
    %1317 = vmatprep.subr.mxu0 0.0
    %1318 = vmatpush1.msra.mxu0 0.0
    %1319 = vmatprep.subr.mxu0 0.0
    %1320 = vmatpush1.msra.mxu0 0.0
    %1321 = vmatprep.subr.mxu0 0.0
    %1322 = vmatpush1.msra.mxu0 0.0
    %1323 = vmatprep.subr.mxu0 0.0
    %1324 = vmatpush1.msra.mxu0 0.0
    %1325 = vmatprep.mubr.f32.mxu0 0.0
    %1326 = vmatmul.mubr.f32.gmra.mrb[0].mxu0 %v1259
    %v1327 = vpop.f32.mrb[0].mxu0
    %v1328 = vadd.f32 0.0, %v1327
    %v1329 = vpop.f32.mrb[0].mxu0
    %1330 = vdwg.mxu0
    %1331 = vrot.lane.b32.xlu0 %v154, 112
    %v1332 = vpop.permute.xlu0 %1331
    %v1335 = vsel %vm165, %v872, 0
    %1337 = vmatprep.subr.mxu0 0.0
    %1338 = vmatpush1.msra.mxu0 %v1332
    %1339 = vmatprep.subr.mxu0 0.0
    %1340 = vmatpush1.msra.mxu0 0.0
    %1341 = vmatprep.subr.mxu0 0.0
    %1342 = vmatpush1.msra.mxu0 0.0
    %1343 = vmatprep.subr.mxu0 0.0
    %1344 = vmatpush1.msra.mxu0 0.0
    %1345 = vmatprep.subr.mxu0 0.0
    %1346 = vmatpush1.msra.mxu0 0.0
    %1347 = vmatprep.subr.mxu0 0.0
    %1348 = vmatpush1.msra.mxu0 0.0
    %1349 = vmatprep.subr.mxu0 0.0
    %1350 = vmatpush1.msra.mxu0 0.0
    %1351 = vmatprep.subr.mxu0 0.0
    %1352 = vmatpush1.msra.mxu0 0.0
    %1353 = vmatprep.subr.mxu0 0.0
    %1354 = vmatpush1.msra.mxu0 0.0
    %1355 = vmatprep.subr.mxu0 0.0
    %1356 = vmatpush1.msra.mxu0 0.0
    %1357 = vmatprep.subr.mxu0 0.0
    %1358 = vmatpush1.msra.mxu0 0.0
    %1359 = vmatprep.subr.mxu0 0.0
    %1360 = vmatpush1.msra.mxu0 0.0
    %1361 = vmatprep.subr.mxu0 0.0
    %1362 = vmatpush1.msra.mxu0 0.0
    %1363 = vmatprep.subr.mxu0 0.0
    %1364 = vmatpush1.msra.mxu0 0.0
    %1365 = vmatprep.subr.mxu0 0.0
    %1366 = vmatpush1.msra.mxu0 0.0
    %1367 = vmatprep.subr.mxu0 0.0
    %1368 = vmatpush1.msra.mxu0 0.0
    %1369 = vmatprep.subr.mxu0 0.0
    %1370 = vmatpush1.msra.mxu0 0.0
    %1371 = vmatprep.subr.mxu0 0.0
    %1372 = vmatpush1.msra.mxu0 0.0
    %1373 = vmatprep.subr.mxu0 0.0
    %1374 = vmatpush1.msra.mxu0 0.0
    %1375 = vmatprep.subr.mxu0 0.0
    %1376 = vmatpush1.msra.mxu0 0.0
    %1377 = vmatprep.subr.mxu0 0.0
    %1378 = vmatpush1.msra.mxu0 0.0
    %1379 = vmatprep.subr.mxu0 0.0
    %1380 = vmatpush1.msra.mxu0 0.0
    %1381 = vmatprep.subr.mxu0 0.0
    %1382 = vmatpush1.msra.mxu0 0.0
    %1383 = vmatprep.subr.mxu0 0.0
    %1384 = vmatpush1.msra.mxu0 0.0
    %1385 = vmatprep.subr.mxu0 0.0
    %1386 = vmatpush1.msra.mxu0 0.0
    %1387 = vmatprep.subr.mxu0 0.0
    %1388 = vmatpush1.msra.mxu0 0.0
    %1389 = vmatprep.subr.mxu0 0.0
    %1390 = vmatpush1.msra.mxu0 0.0
    %1391 = vmatprep.subr.mxu0 0.0
    %1392 = vmatpush1.msra.mxu0 0.0
    %1393 = vmatprep.subr.mxu0 0.0
    %1394 = vmatpush1.msra.mxu0 0.0
    %1395 = vmatprep.subr.mxu0 0.0
    %1396 = vmatpush1.msra.mxu0 0.0
    %1397 = vmatprep.subr.mxu0 0.0
    %1398 = vmatpush1.msra.mxu0 0.0
    %1399 = vmatprep.subr.mxu0 0.0
    %1400 = vmatpush1.msra.mxu0 0.0
    %1401 = vmatprep.mubr.f32.mxu0 0.0
    %1402 = vmatmul.mubr.f32.gmra.mrb[0].mxu0 %v1335
    %v1403 = vpop.f32.mrb[0].mxu0
    %v1404 = vadd.f32 0.0, %v1403
    %v1405 = vpop.f32.mrb[0].mxu0
    %1406 = vdwg.mxu0
    %1407 = vrot.lane.b32.xlu0 %v159, 112
    %v1408 = vpop.permute.xlu0 %1407
    %v1411 = vsel %vm165, %v874, 0
    %1413 = vmatprep.subr.mxu0 0.0
    %1414 = vmatpush1.msra.mxu0 %v1408
    %1415 = vmatprep.subr.mxu0 0.0
    %1416 = vmatpush1.msra.mxu0 0.0
    %1417 = vmatprep.subr.mxu0 0.0
    %1418 = vmatpush1.msra.mxu0 0.0
    %1419 = vmatprep.subr.mxu0 0.0
    %1420 = vmatpush1.msra.mxu0 0.0
    %1421 = vmatprep.subr.mxu0 0.0
    %1422 = vmatpush1.msra.mxu0 0.0
    %1423 = vmatprep.subr.mxu0 0.0
    %1424 = vmatpush1.msra.mxu0 0.0
    %1425 = vmatprep.subr.mxu0 0.0
    %1426 = vmatpush1.msra.mxu0 0.0
    %1427 = vmatprep.subr.mxu0 0.0
    %1428 = vmatpush1.msra.mxu0 0.0
    %1429 = vmatprep.subr.mxu0 0.0
    %1430 = vmatpush1.msra.mxu0 0.0
    %1431 = vmatprep.subr.mxu0 0.0
    %1432 = vmatpush1.msra.mxu0 0.0
    %1433 = vmatprep.subr.mxu0 0.0
    %1434 = vmatpush1.msra.mxu0 0.0
    %1435 = vmatprep.subr.mxu0 0.0
    %1436 = vmatpush1.msra.mxu0 0.0
    %1437 = vmatprep.subr.mxu0 0.0
    %1438 = vmatpush1.msra.mxu0 0.0
    %1439 = vmatprep.subr.mxu0 0.0
    %1440 = vmatpush1.msra.mxu0 0.0
    %1441 = vmatprep.subr.mxu0 0.0
    %1442 = vmatpush1.msra.mxu0 0.0
    %1443 = vmatprep.subr.mxu0 0.0
    %1444 = vmatpush1.msra.mxu0 0.0
    %1445 = vmatprep.subr.mxu0 0.0
    %1446 = vmatpush1.msra.mxu0 0.0
    %1447 = vmatprep.subr.mxu0 0.0
    %1448 = vmatpush1.msra.mxu0 0.0
    %1449 = vmatprep.subr.mxu0 0.0
    %1450 = vmatpush1.msra.mxu0 0.0
    %1451 = vmatprep.subr.mxu0 0.0
    %1452 = vmatpush1.msra.mxu0 0.0
    %1453 = vmatprep.subr.mxu0 0.0
    %1454 = vmatpush1.msra.mxu0 0.0
    %1455 = vmatprep.subr.mxu0 0.0
    %1456 = vmatpush1.msra.mxu0 0.0
    %1457 = vmatprep.subr.mxu0 0.0
    %1458 = vmatpush1.msra.mxu0 0.0
    %1459 = vmatprep.subr.mxu0 0.0
    %1460 = vmatpush1.msra.mxu0 0.0
    %1461 = vmatprep.subr.mxu0 0.0
    %1462 = vmatpush1.msra.mxu0 0.0
    %1463 = vmatprep.subr.mxu0 0.0
    %1464 = vmatpush1.msra.mxu0 0.0
    %1465 = vmatprep.subr.mxu0 0.0
    %1466 = vmatpush1.msra.mxu0 0.0
    %1467 = vmatprep.subr.mxu0 0.0
    %1468 = vmatpush1.msra.mxu0 0.0
    %1469 = vmatprep.subr.mxu0 0.0
    %1470 = vmatpush1.msra.mxu0 0.0
    %1471 = vmatprep.subr.mxu0 0.0
    %1472 = vmatpush1.msra.mxu0 0.0
    %1473 = vmatprep.subr.mxu0 0.0
    %1474 = vmatpush1.msra.mxu0 0.0
    %1475 = vmatprep.subr.mxu0 0.0
    %1476 = vmatpush1.msra.mxu0 0.0
    %1477 = vmatprep.mubr.f32.mxu0 0.0
    %1478 = vmatmul.mubr.f32.gmra.mrb[0].mxu0 %v1411
    %v1479 = vpop.f32.mrb[0].mxu0
    %v1480 = vadd.f32 0.0, %v1479
    %v1481 = vpop.f32.mrb[0].mxu0
    %1482 = vdwg.mxu0
    %1485 = vrot.lane.b32.xlu0 %v1024, 8
    %v1486 = vpop.permute.xlu0 %1485
    %1487 = vrot.lane.b32.xlu0 %v1328, 8
    %v1488 = vpop.permute.xlu0 %1487
    %1493 = vrot.lane.b32.xlu0 %v1100, 16
    %v1494 = vpop.permute.xlu0 %1493
    %1495 = vrot.lane.b32.xlu0 %v1404, 16
    %v1496 = vpop.permute.xlu0 %1495
    %1501 = vrot.lane.b32.xlu0 %v1176, 24
    %v1502 = vpop.permute.xlu0 %1501
    %1503 = vrot.lane.b32.xlu0 %v1480, 24
    %v1504 = vpop.permute.xlu0 %1503
    %v1507 = vsel %vm165, %v948, %v1486
    %v1508 = vsel %vm165, %v1252, %v1488
    %vm1509 = vcmask 130048
    %v1510 = vsel %vm1509, %v1507, %v1494
    %v1511 = vsel %vm1509, %v1508, %v1496
    %v1512 = vsel %vm32, %v1510, %v1502
    %v1513 = vsel %vm32, %v1511, %v1504
    %v1514 = vld [vmem:[%s4] sm:$0x7]
    %v1515 = vld [vmem:[%s1] sm:$0xff]
    %v1516 = vld [vmem:[%s1 + $0x8] sm:$0xff]
    %v1517 = vlaneseq
    %v1518 = vshrl.u32 %v1517, 7
    %v1519 = vsub.s32 0, %v1518
    %v1520 = vrot.slane %v1514, %v1519
    %v1521 = vadd.f32 %v1515, %v1520
    %v1522 = vadd.f32 %v1516, %v1520
    %v1523 = vld [vmem:[%s3] sm:$0xff]
    %v1524 = vld [vmem:[%s3 + $0x8] sm:$0xff]
    %v1525 = vld [vmem:[%s3 + $0x10] sm:$0xff]
    %v1526 = vld [vmem:[%s3 + $0x18] sm:$0xff]
    %vm1527 = vcmask 261120
    %v1529 = vsel %vm1527, %v1512, 0
    %v1532 = vsel %vm1527, %v1513, 0
    %1534 = vmatprep.subr.mxu0 0.0
    %1535 = vmatpush1.msra.mxu0 %v1523
    %1536 = vmatprep.subr.mxu0 0.0
    %1537 = vmatpush1.msra.mxu0 %v1524
    %1538 = vmatprep.subr.mxu0 0.0
    %1539 = vmatpush1.msra.mxu0 %v1525
    %1540 = vmatprep.subr.mxu0 0.0
    %1541 = vmatpush1.msra.mxu0 %v1526
    %1542 = vmatprep.subr.mxu0 0.0
    %1543 = vmatpush1.msra.mxu0 0.0
    %1544 = vmatprep.subr.mxu0 0.0
    %1545 = vmatpush1.msra.mxu0 0.0
    %1546 = vmatprep.subr.mxu0 0.0
    %1547 = vmatpush1.msra.mxu0 0.0
    %1548 = vmatprep.subr.mxu0 0.0
    %1549 = vmatpush1.msra.mxu0 0.0
    %1550 = vmatprep.subr.mxu0 0.0
    %1551 = vmatpush1.msra.mxu0 0.0
    %1552 = vmatprep.subr.mxu0 0.0
    %1553 = vmatpush1.msra.mxu0 0.0
    %1554 = vmatprep.subr.mxu0 0.0
    %1555 = vmatpush1.msra.mxu0 0.0
    %1556 = vmatprep.subr.mxu0 0.0
    %1557 = vmatpush1.msra.mxu0 0.0
    %1558 = vmatprep.subr.mxu0 0.0
    %1559 = vmatpush1.msra.mxu0 0.0
    %1560 = vmatprep.subr.mxu0 0.0
    %1561 = vmatpush1.msra.mxu0 0.0
    %1562 = vmatprep.subr.mxu0 0.0
    %1563 = vmatpush1.msra.mxu0 0.0
    %1564 = vmatprep.subr.mxu0 0.0
    %1565 = vmatpush1.msra.mxu0 0.0
    %1566 = vmatprep.subr.mxu0 0.0
    %1567 = vmatpush1.msra.mxu0 0.0
    %1568 = vmatprep.subr.mxu0 0.0
    %1569 = vmatpush1.msra.mxu0 0.0
    %1570 = vmatprep.subr.mxu0 0.0
    %1571 = vmatpush1.msra.mxu0 0.0
    %1572 = vmatprep.subr.mxu0 0.0
    %1573 = vmatpush1.msra.mxu0 0.0
    %1574 = vmatprep.subr.mxu0 0.0
    %1575 = vmatpush1.msra.mxu0 0.0
    %1576 = vmatprep.subr.mxu0 0.0
    %1577 = vmatpush1.msra.mxu0 0.0
    %1578 = vmatprep.subr.mxu0 0.0
    %1579 = vmatpush1.msra.mxu0 0.0
    %1580 = vmatprep.subr.mxu0 0.0
    %1581 = vmatpush1.msra.mxu0 0.0
    %1582 = vmatprep.subr.mxu0 0.0
    %1583 = vmatpush1.msra.mxu0 0.0
    %1584 = vmatprep.subr.mxu0 0.0
    %1585 = vmatpush1.msra.mxu0 0.0
    %1586 = vmatprep.subr.mxu0 0.0
    %1587 = vmatpush1.msra.mxu0 0.0
    %1588 = vmatprep.subr.mxu0 0.0
    %1589 = vmatpush1.msra.mxu0 0.0
    %1590 = vmatprep.subr.mxu0 0.0
    %1591 = vmatpush1.msra.mxu0 0.0
    %1592 = vmatprep.subr.mxu0 0.0
    %1593 = vmatpush1.msra.mxu0 0.0
    %1594 = vmatprep.subr.mxu0 0.0
    %1595 = vmatpush1.msra.mxu0 0.0
    %1596 = vmatprep.subr.mxu0 0.0
    %1597 = vmatpush1.msra.mxu0 0.0
    %1598 = vmatprep.mubr.f32.mxu0 0.0
    %1599 = vmatmul.mubr.f32.gmra.mrb[0].mxu0 %v1529
    %v1600 = vpop.f32.mrb[0].mxu0
    %v1601 = vadd.f32 0.0, %v1600
    %v1602 = vpop.f32.mrb[0].mxu0
    %1603 = vmatprep.mubr.f32.mxu0 0.0
    %1604 = vmatmul.mubr.f32.gmra.mrb[0].mxu0 %v1532
    %v1605 = vpop.f32.mrb[0].mxu0
    %v1606 = vadd.f32 0.0, %v1605
    %v1607 = vpop.f32.mrb[0].mxu0
    %1608 = vdwg.mxu0
    %v1609 = vadd.f32 %v1521, %v1601
    %v1610 = vadd.f32 %v1522, %v1606
    %v1611 = vsel %vm1527, %v1609, 0.0
    %1612 = vadd.xlane.f32.xlu0 %v1611
    %v1613 = vpop.xlane.xlu0 %1612
    %v1614 = vsel %vm1527, %v1610, 0.0
    %1615 = vadd.xlane.f32.xlu0 %v1614
    %v1616 = vpop.xlane.xlu0 %1615
    %v1617 = vrcp.pop 32.0
    %v1618 = vmul.f32 %v1613, %v1617
    %v1619 = vmul.f32 %v1616, %v1617
    %v1620 = vsub.f32 %v1609, %v1618
    %v1621 = vsub.f32 %v1610, %v1619
    %v1622 = vmul.f32 %v1620, %v1620
    %v1623 = vmul.f32 %v1621, %v1621
    %v1624 = vsel %vm1527, %v1622, 0.0
    %1625 = vadd.xlane.f32.xlu0 %v1624
    %v1626 = vpop.xlane.xlu0 %1625
    %v1627 = vsel %vm1527, %v1623, 0.0
    %1628 = vadd.xlane.f32.xlu0 %v1627
    %v1629 = vpop.xlane.xlu0 %1628
    %v1630 = vmul.f32 %v1626, %v1617
    %v1631 = vmul.f32 %v1629, %v1617
    %v1632 = vadd.f32 %v1630, 1e-05
    %v1633 = vadd.f32 %v1631, 1e-05
    %v1634 = vrsqrt.pop %v1632
    %v1635 = vrsqrt.pop %v1633
    %v1636 = vmul.f32 %v1620, %v1634
    %v1637 = vmul.f32 %v1621, %v1635
    %v1638 = vlaneseq
    %v1639 = vshrl.u32 %v1638, 7
    %v1640 = vsub.s32 1, %v1639
    %v1641 = vrot.slane %v1514, %v1640
    %v1642 = vmul.f32 %v1636, %v1641
    %v1643 = vmul.f32 %v1637, %v1641
    %v1644 = vlaneseq
    %v1645 = vshrl.u32 %v1644, 7
    %v1646 = vsub.s32 2, %v1645
    %v1647 = vrot.slane %v1514, %v1646
    %v1648 = vadd.f32 %v1642, %v1647
    %v1649 = vadd.f32 %v1643, %v1647
    %1650 = vst.msk [vmem:[#allocation2] sm:$0xff] %vm1527, %v1648
    %1651 = vst.msk [vmem:[#allocation2 + $0x8] sm:$0xff] %vm1527, %v1649
    // Predicated region
    $region22: #{self_attention_forward.1} parent=1 // pred_check
      _
    $region23: #{self_attention_forward.1} parent=1 // pred_check_branch
      %1653 = sbr.rel (0) target = $region25
    $region24: #{self_attention_forward.1} parent=1 // pred_region
      %s1655 = ssub.s32 256, 256
      %1656 = vsyncadd [#allocation3], %s1655
      %s1657 = sshll.u32 [#allocation2], 4
      %s1658 = int_to_ptr.vmem [resolvable:$true] %s1657
      %1663 = dma.vmem_to_hbm [thread:$0]  %s1658, 256, %s5, [#allocation3], 128, 128, 8
    $region25: #{self_attention_forward.1} parent=1 // pred_fallthru
      _
    // Predicated region
    $region26: #{self_attention_forward.1} parent=1 // pred_check
      _
    $region27: #{self_attention_forward.1} parent=1 // pred_check_branch
      %1665 = sbr.rel (0) target = $region29
    $region28: #{self_attention_forward.1} parent=1 // pred_region
      %1666 = dma.done [#allocation3], 256
    $region29: #{self_attention_forward.1} parent=1 // pred_fallthru
      _
    %1667 = vsyncpa [#allocation3], 1

</llo_original>
